<compile_context>
chip_gen: v5e
topology: v5e:2x2
jax: 0.10.0
libtpu: 0.0.40
codegen_flags: <defaults>
</compile_context>

<pallas_src>
import numpy as np
import jax
import jax.numpy as jnp
from jax.experimental import pallas as pl
from jax.experimental.pallas import tpu as pltpu


def _round_up(x, m):
    return ((x + m - 1) // m) * m


# ----------------------------------------------------------------------------
# Pallas kernel: full MPN forward for one graph batch per grid step.
# ----------------------------------------------------------------------------
def make_mpn_kernel(depth: int):
    def kernel(f_bonds_ref, f_atoms_ref, m_struct_ref, a2b_ref,
               wi_ref, wh_ref, wo_top_ref, wo_bot_ref, bo_ref,
               p_atoms_ref, p_bonds_ref, inv_a_ref, inv_b_ref,
               out_atoms_ref, out_bonds_ref,
               msg_sc):
        f32 = jnp.float32
        bf16 = jnp.bfloat16

        # input = W_i(f_bonds) ; message = ReLU(input)
        # Padding bond rows of f_bonds are zero and W_i has no bias, so padding
        # rows of inp / message are exactly zero -> no per-step masking needed.
        inp = jnp.dot(f_bonds_ref[...], wi_ref[...], preferred_element_type=f32)
        msg_sc[...] = jnp.maximum(inp, 0.0).astype(bf16)

        # Loop-invariant half of W_o (atom-feature side), issued before the loop.
        atom_top = jnp.dot(f_atoms_ref[...], wo_top_ref[...],
                           preferred_element_type=f32)

        # depth-1 message-passing steps.  Graph structure is one precomputed
        # matrix:  a_message[b2a] - message[b2revb]  ==  M_struct @ message.
        for _ in range(depth - 1):
            pre = jnp.dot(m_struct_ref[...], msg_sc[...],
                          preferred_element_type=f32)
            upd = jnp.dot(pre.astype(bf16), wh_ref[...],
                          preferred_element_type=f32)
            # dropout == identity (eval); elementwise math in f32, single bf16
            # cast on the scratch write.
            msg_sc[...] = jnp.maximum(inp + upd, 0.0).astype(bf16)

        # Final neighbor aggregation + split W_o (no (NAP, AFP+HP) concat copy).
        amsg = jnp.dot(a2b_ref[...], msg_sc[...], preferred_element_type=f32)
        atom_h = jnp.maximum(
            atom_top
            + jnp.dot(amsg.astype(bf16), wo_bot_ref[...],
                      preferred_element_type=f32)
            + bo_ref[...],
            0.0)
        atom_h_bf = atom_h.astype(bf16)

        # Readout: P is a 0/1 replicate @ segment-sum matrix (exact in bf16);
        # exact 1/a_size mean weights applied as a cheap f32 VPU scale.
        out_atoms_ref[...] = inv_a_ref[...] * jnp.dot(
            p_atoms_ref[...], atom_h_bf, preferred_element_type=f32)
        out_bonds_ref[...] = inv_b_ref[...] * jnp.dot(
            p_bonds_ref[...], atom_h_bf, preferred_element_type=f32)

    return kernel


def mpn_encoder_pallas(f_bonds_p, f_atoms_p, m_struct_p, a2b_p,
                       wi_p, wh_p, wo_top_p, wo_bot_p, bo_p,
                       p_atoms, p_bonds, inv_a, inv_b,
                       depth, ma, mb, hidden):
    G, nbp, bfp = f_bonds_p.shape
    nap, afp = f_atoms_p.shape[1], f_atoms_p.shape[2]
    hp = wi_p.shape[1]
    map_, mbp = p_atoms.shape[1], p_bonds.shape[1]

    def batched(r, c):   # per-graph-batch array: leading grid dim squeezed away
        return pl.BlockSpec((None, r, c), lambda g: (g, 0, 0))

    def shared(r, c):    # weights shared across the grid (same block each step)
        return pl.BlockSpec((r, c), lambda g: (0, 0))

    in_specs = [
        batched(nbp, bfp),     # f_bonds
        batched(nap, afp),     # f_atoms
        batched(nbp, nbp),     # M_struct
        batched(nap, nbp),     # A2B incidence
        shared(bfp, hp),       # W_i
        shared(hp, hp),        # W_h
        shared(afp, hp),       # W_o (atom-feature half)
        shared(hp, hp),        # W_o (message half)
        shared(1, hp),         # b_o
        batched(map_, nap),    # P_atoms (0/1)
        batched(mbp, nap),     # P_bonds (0/1)
        batched(map_, hp),     # 1/a_size per atom-output row
        batched(mbp, hp),      # 1/a_size per bond-output row
    ]
    out_specs = (batched(map_, hp), batched(mbp, hp))

    flops = int(2 * G * (nbp * bfp * hp
                         + (depth - 1) * (nbp * nbp * hp + nbp * hp * hp)
                         + nap * nbp * hp + nap * afp * hp + nap * hp * hp
                         + (map_ + mbp) * nap * hp))
    args = (f_bonds_p, f_atoms_p, m_struct_p, a2b_p, wi_p, wh_p,
            wo_top_p, wo_bot_p, bo_p, p_atoms, p_bonds, inv_a, inv_b)
    bytes_accessed = int(sum(int(np.prod(x.shape)) * x.dtype.itemsize for x in args)
                         + G * (map_ + mbp) * hp * 4)

    out_atoms, out_bonds = pl.pallas_call(
        make_mpn_kernel(depth),
        grid=(G,),
        out_shape=(jax.ShapeDtypeStruct((G, map_, hp), jnp.float32),
                   jax.ShapeDtypeStruct((G, mbp, hp), jnp.float32)),
        in_specs=in_specs,
        out_specs=out_specs,
        scratch_shapes=[pltpu.VMEM((nbp, hp), jnp.bfloat16)],   # message (bf16)
        compiler_params=pltpu.CompilerParams(
            dimension_semantics=("parallel",),   # v7x: one graph batch per TC
            vmem_limit_bytes=32 * 1024 * 1024),
        cost_estimate=pl.CostEstimate(flops=flops, transcendentals=0,
                                      bytes_accessed=bytes_accessed),
    )(*args)
    # strip lane / row padding back to the module's true output shapes
    return out_atoms[:, :ma, :hidden], out_bonds[:, :mb, :hidden]


# ----------------------------------------------------------------------------
# Pure-JAX reference (mirrors the PyTorch forward with real gathers, f32)
# ----------------------------------------------------------------------------
def mpn_reference(f_atoms, f_bonds, a2b_idx, b2a_idx, b2revb_idx,
                  Wi, Wh, Wo, bo, a_scope, b_scope, depth):
    inp = f_bonds @ Wi
    message = jnp.maximum(inp, 0.0)
    for _ in range(depth - 1):
        nei = message[a2b_idx]                 # (NA, max_nb, H)
        a_msg = nei.sum(axis=1)                # (NA, H)
        rev_msg = message[b2revb_idx]
        message = a_msg[b2a_idx] - rev_msg
        message = message @ Wh
        message = jnp.maximum(inp + message, 0.0)
    nei = message[a2b_idx]
    a_msg = nei.sum(axis=1)
    a_input = jnp.concatenate([f_atoms, a_msg], axis=1)
    atom_h = jnp.maximum(a_input @ Wo + bo, 0.0)

    mol_vecs_atoms, mol_vecs_bonds = [], []
    for i, (a_start, a_size) in enumerate(a_scope):
        b_start, b_size_read = b_scope[i]
        if a_size == 0:
            continue
        mv = atom_h[a_start:a_start + a_size].sum(axis=0) / a_size
        for _ in range(a_size):
            mol_vecs_atoms.append(mv)
        for _ in range(b_size_read + 1):
            mol_vecs_bonds.append(mv)
    return jnp.stack(mol_vecs_atoms, 0), jnp.stack(mol_vecs_bonds, 0)


# ----------------------------------------------------------------------------
# Synthetic graph + host-side structure / readout folding
# ----------------------------------------------------------------------------
def build_synthetic_graph():
    # 2 molecules: chain of 3 atoms and chain of 4 atoms (chemprop-style
    # zero-padded atom 0 / bond 0; directed bonds appear as reverse pairs).
    NA = 8           # atoms incl. padding row 0
    NB = 11          # directed bonds incl. padding row 0
    max_nb = 2
    a2b_lists = [[] for _ in range(NA)]
    b2a = np.zeros(NB, dtype=np.int32)
    b2revb = np.zeros(NB, dtype=np.int32)

    undirected = [(1, 2), (2, 3), (4, 5), (5, 6), (6, 7)]
    b = 1
    for (u, v) in undirected:
        b1, b2 = b, b + 1          # b1: u->v, b2: v->u
        a2b_lists[v].append(b1)
        a2b_lists[u].append(b2)
        b2a[b1], b2a[b2] = u, v
        b2revb[b1], b2revb[b2] = b2, b1
        b += 2

    a2b_idx = np.zeros((NA, max_nb), dtype=np.int32)
    for a in range(NA):
        for k, bb in enumerate(a2b_lists[a]):
            a2b_idx[a, k] = bb

    a_scope = [(1, 3), (4, 4)]
    b_scope = [(1, 4), (5, 6)]

    # Dense scatter-sum incidence (columns include padding bond 0; message[0]==0)
    A2B = np.zeros((NA, NB), dtype=np.float32)
    for a in range(NA):
        for k in range(max_nb):
            A2B[a, a2b_idx[a, k]] += 1.0

    return NA, NB, a2b_idx, b2a, b2revb, a_scope, b_scope, A2B


def build_struct_matrix(A2B, b2a, b2revb, NB, NBP):
    """M_struct = Gather(b2a)·A2B − RevPerm, padding rows/cols zeroed."""
    M = np.zeros((NBP, NBP), np.float32)
    for b in range(1, NB):             # skip padding bond 0
        M[b, :NB] = A2B[b2a[b], :NB]
        M[b, b2revb[b]] -= 1.0
    return M                            # entries in {-1, 0, 1, 2}


def build_readout(a_scope, b_scope, NA):
    NM = len(a_scope)
    Sseg = np.zeros((NM, NA), np.float32)
    for i, (a_start, a_size) in enumerate(a_scope):
        Sseg[i, a_start:a_start + a_size] = 1.0
    MA = sum(s for _, s in a_scope)
    MB = sum(s + 1 for _, s in b_scope)     # forward replicates b_size+1 per mol
    Ratoms = np.zeros((MA, NM), np.float32)
    Rbonds = np.zeros((MB, NM), np.float32)
    inv_a = np.zeros(MA, np.float32)
    inv_b = np.zeros(MB, np.float32)
    ra = rb = 0
    for i, (_, a_size) in enumerate(a_scope):
        Ratoms[ra:ra + a_size, i] = 1.0
        inv_a[ra:ra + a_size] = 1.0 / a_size
        ra += a_size
        nrep = b_scope[i][1] + 1
        Rbonds[rb:rb + nrep, i] = 1.0
        inv_b[rb:rb + nrep] = 1.0 / a_size
        rb += nrep
    P_atoms = Ratoms @ Sseg                 # 0/1 replicate @ segment-sum
    P_bonds = Rbonds @ Sseg
    return P_atoms, P_bonds, inv_a, inv_b, MA, MB


if __name__ == "__main__":
    HIDDEN, HP = 50, 128
    ATOM_FDIM, AFP = 24, 128
    BOND_FDIM, BFP = 16, 128
    DEPTH = 3
    G = 2    # two BatchMolGraphs processed over a "parallel" grid axis

    NA, NB, a2b_idx, b2a, b2revb, a_scope, b_scope, A2B = build_synthetic_graph()
    NAP, NBP = _round_up(NA, 8), _round_up(NB, 8)
    P_atoms_np, P_bonds_np, inv_a_np, inv_b_np, MA, MB = build_readout(
        a_scope, b_scope, NA)
    MAP, MBP = _round_up(MA, 8), _round_up(MB, 8)
    M_struct = build_struct_matrix(A2B, b2a, b2revb, NB, NBP)

    key = jax.random.PRNGKey(0)
    kf, kw = jax.random.split(key)
    kg = jax.random.split(kf, G)

    # per-graph-batch features (same topology, different features)
    f_atoms_list, f_bonds_list = [], []
    for g in range(G):
        k1, k2 = jax.random.split(kg[g])
        fa = jax.random.normal(k1, (NA, ATOM_FDIM), jnp.float32).at[0].set(0.0)
        fb = jax.random.normal(k2, (NB, BOND_FDIM), jnp.float32).at[0].set(0.0)
        f_atoms_list.append(fa)
        f_bonds_list.append(fb)

    k3, k4, k5, k6 = jax.random.split(kw, 4)
    Wi = jax.random.normal(k3, (BOND_FDIM, HIDDEN), jnp.float32) * 0.1
    Wh = jax.random.normal(k4, (HIDDEN, HIDDEN), jnp.float32) * 0.1
    Wo = jax.random.normal(k5, (ATOM_FDIM + HIDDEN, HIDDEN), jnp.float32) * 0.1
    bo = jax.random.normal(k6, (HIDDEN,), jnp.float32) * 0.1

    def pad2(x, r, c):
        out = np.zeros((r, c), np.float32)
        x = np.asarray(x, np.float32)
        out[:x.shape[0], :x.shape[1]] = x
        return out

    # Padded operands (lane dims padded to 128, rows to multiples of 8); big
    # matmul inputs in bf16 (all integer-valued structure matrices exact in bf16).
    f_atoms_p = jnp.asarray(np.stack([pad2(f, NAP, AFP) for f in f_atoms_list]),
                            jnp.bfloat16)
    f_bonds_p = jnp.asarray(np.stack([pad2(f, NBP, BFP) for f in f_bonds_list]),
                            jnp.bfloat16)
    m_struct_p = jnp.asarray(np.stack([M_struct] * G), jnp.bfloat16)
    a2b_p = jnp.asarray(np.stack([pad2(A2B, NAP, NBP)] * G), jnp.bfloat16)
    p_atoms_p = jnp.asarray(np.stack([pad2(P_atoms_np, MAP, NAP)] * G), jnp.bfloat16)
    p_bonds_p = jnp.asarray(np.stack([pad2(P_bonds_np, MBP, NAP)] * G), jnp.bfloat16)
    inv_a_p = jnp.asarray(
        np.stack([pad2(np.repeat(inv_a_np[:, None], HP, 1), MAP, HP)] * G), jnp.float32)
    inv_b_p = jnp.asarray(
        np.stack([pad2(np.repeat(inv_b_np[:, None], HP, 1), MBP, HP)] * G), jnp.float32)

    wi_p = jnp.asarray(pad2(Wi, BFP, HP), jnp.bfloat16)
    wh_p = jnp.asarray(pad2(Wh, HP, HP), jnp.bfloat16)
    wo_top_p = jnp.asarray(pad2(np.asarray(Wo)[:ATOM_FDIM], AFP, HP), jnp.bfloat16)
    wo_bot_p = jnp.asarray(pad2(np.asarray(Wo)[ATOM_FDIM:], HP, HP), jnp.bfloat16)
    bo_p = jnp.asarray(pad2(np.asarray(bo).reshape(1, HIDDEN), 1, HP), jnp.float32)

    out_atoms, out_bonds = mpn_encoder_pallas(
        f_bonds_p, f_atoms_p, m_struct_p, a2b_p,
        wi_p, wh_p, wo_top_p, wo_bot_p, bo_p,
        p_atoms_p, p_bonds_p, inv_a_p, inv_b_p,
        DEPTH, MA, MB, HIDDEN)
    jax.block_until_ready((out_atoms, out_bonds))

    # Correctness check against a pure-JAX f32 mirror of the PyTorch forward.
    for g in range(G):
        ref_atoms, ref_bonds = mpn_reference(
            f_atoms_list[g], f_bonds_list[g], jnp.asarray(a2b_idx),
            jnp.asarray(b2a), jnp.asarray(b2revb), Wi, Wh, Wo, bo,
            a_scope, b_scope, DEPTH)
        np.testing.assert_allclose(np.asarray(out_atoms[g]), np.asarray(ref_atoms),
                                   rtol=2e-2, atol=2e-2)
        np.testing.assert_allclose(np.asarray(out_bonds[g]), np.asarray(ref_bonds),
                                   rtol=2e-2, atol=2e-2)

    assert out_atoms.shape == (G, 7, HIDDEN) and out_bonds.shape == (G, 12, HIDDEN)
    print("KERNEL_OK")
</pallas_src>

<mosaic_0001>
module attributes {stable_mosaic.version = 11 : i64} {
  func.func @kernel(%arg0: i32, %arg1: memref<1x16x128xbf16, #tpu.memory_space<vmem>>, %arg2: memref<1x8x128xbf16, #tpu.memory_space<vmem>>, %arg3: memref<1x16x16xbf16, #tpu.memory_space<vmem>>, %arg4: memref<1x8x16xbf16, #tpu.memory_space<vmem>>, %arg5: memref<128x128xbf16, #tpu.memory_space<vmem>>, %arg6: memref<128x128xbf16, #tpu.memory_space<vmem>>, %arg7: memref<128x128xbf16, #tpu.memory_space<vmem>>, %arg8: memref<128x128xbf16, #tpu.memory_space<vmem>>, %arg9: memref<1x128xf32, #tpu.memory_space<vmem>>, %arg10: memref<1x8x8xbf16, #tpu.memory_space<vmem>>, %arg11: memref<1x16x8xbf16, #tpu.memory_space<vmem>>, %arg12: memref<1x8x128xf32, #tpu.memory_space<vmem>>, %arg13: memref<1x16x128xf32, #tpu.memory_space<vmem>>, %arg14: memref<1x8x128xf32, #tpu.memory_space<vmem>>, %arg15: memref<1x16x128xf32, #tpu.memory_space<vmem>>, %arg16: memref<16x128xbf16, #tpu.memory_space<vmem>>) attributes {dimension_semantics = [#tpu.dimension_semantics<parallel>], iteration_bounds = array<i64: 2>, scalar_prefetch = 0 : i64, scratch_operands = 1 : i64, tpu.core_type = #tpu.core_type<tc>, window_params = [{transform_indices = @transform_0, window_bounds = array<i64: 1, 16, 128>}, {transform_indices = @transform_1, window_bounds = array<i64: 1, 8, 128>}, {transform_indices = @transform_2, window_bounds = array<i64: 1, 16, 16>}, {transform_indices = @transform_3, window_bounds = array<i64: 1, 8, 16>}, {pipeline_mode = #tpu.pipeline_mode<synchronous>, transform_indices = @transform_4, window_bounds = array<i64: 128, 128>}, {pipeline_mode = #tpu.pipeline_mode<synchronous>, transform_indices = @transform_5, window_bounds = array<i64: 128, 128>}, {pipeline_mode = #tpu.pipeline_mode<synchronous>, transform_indices = @transform_6, window_bounds = array<i64: 128, 128>}, {pipeline_mode = #tpu.pipeline_mode<synchronous>, transform_indices = @transform_7, window_bounds = array<i64: 128, 128>}, {pipeline_mode = #tpu.pipeline_mode<synchronous>, transform_indices = @transform_8, window_bounds = array<i64: 1, 128>}, {transform_indices = @transform_9, window_bounds = array<i64: 1, 8, 8>}, {transform_indices = @transform_10, window_bounds = array<i64: 1, 16, 8>}, {transform_indices = @transform_11, window_bounds = array<i64: 1, 8, 128>}, {transform_indices = @transform_12, window_bounds = array<i64: 1, 16, 128>}, {transform_indices = @transform_13, window_bounds = array<i64: 1, 8, 128>}, {transform_indices = @transform_14, window_bounds = array<i64: 1, 16, 128>}]} {
    %c0 = arith.constant 0 : index
    %c0_0 = arith.constant 0 : index
    %c0_1 = arith.constant 0 : index
    %0 = vector.load %arg1[%c0, %c0_0, %c0_1] : memref<1x16x128xbf16, #tpu.memory_space<vmem>>, vector<1x16x128xbf16>
    %1 = vector.shape_cast %0 : vector<1x16x128xbf16> to vector<16x128xbf16>
    %c0_2 = arith.constant 0 : index
    %c0_3 = arith.constant 0 : index
    %2 = vector.load %arg5[%c0_2, %c0_3] : memref<128x128xbf16, #tpu.memory_space<vmem>>, vector<128x128xbf16>
    %cst = arith.constant dense<0.000000e+00> : vector<16x128xf32>
    %3 = tpu.matmul %1, %2, %cst {dimension_numbers = #tpu.dot_dimension_numbers<[1], [0], [0], [1], [0, 0, 1, 1], [], []>} : vector<16x128xbf16>, vector<128x128xbf16>, vector<16x128xf32> -> vector<16x128xf32>
    %cst_4 = arith.constant 0.000000e+00 : f32
    %4 = vector.broadcast %cst_4 : f32 to vector<16x128xf32>
    %5 = arith.maximumf %3, %4 : vector<16x128xf32>
    %6 = arith.truncf %5 : vector<16x128xf32> to vector<16x128xbf16>
    %c0_5 = arith.constant 0 : index
    %c0_6 = arith.constant 0 : index
    %7 = vector.load %arg16[%c0_5, %c0_6] : memref<16x128xbf16, #tpu.memory_space<vmem>>, vector<16x128xbf16>
    tpu.vector_store %arg16[%c0_5, %c0_6], %6 {strides = array<i32>} : memref<16x128xbf16, #tpu.memory_space<vmem>>, vector<16x128xbf16>,
    %c0_7 = arith.constant 0 : index
    %c0_8 = arith.constant 0 : index
    %c0_9 = arith.constant 0 : index
    %8 = vector.load %arg2[%c0_7, %c0_8, %c0_9] : memref<1x8x128xbf16, #tpu.memory_space<vmem>>, vector<1x8x128xbf16>
    %9 = vector.shape_cast %8 : vector<1x8x128xbf16> to vector<8x128xbf16>
    %c0_10 = arith.constant 0 : index
    %c0_11 = arith.constant 0 : index
    %10 = vector.load %arg7[%c0_10, %c0_11] : memref<128x128xbf16, #tpu.memory_space<vmem>>, vector<128x128xbf16>
    %cst_12 = arith.constant dense<0.000000e+00> : vector<8x128xf32>
    %11 = tpu.matmul %9, %10, %cst_12 {dimension_numbers = #tpu.dot_dimension_numbers<[1], [0], [0], [1], [0, 0, 1, 1], [], []>} : vector<8x128xbf16>, vector<128x128xbf16>, vector<8x128xf32> -> vector<8x128xf32>
    %c0_13 = arith.constant 0 : index
    %c0_14 = arith.constant 0 : index
    %c0_15 = arith.constant 0 : index
    %12 = vector.load %arg3[%c0_13, %c0_14, %c0_15] : memref<1x16x16xbf16, #tpu.memory_space<vmem>>, vector<1x16x16xbf16>
    %13 = vector.shape_cast %12 : vector<1x16x16xbf16> to vector<16x16xbf16>
    %c0_16 = arith.constant 0 : index
    %c0_17 = arith.constant 0 : index
    %14 = vector.load %arg16[%c0_16, %c0_17] : memref<16x128xbf16, #tpu.memory_space<vmem>>, vector<16x128xbf16>
    %cst_18 = arith.constant dense<0.000000e+00> : vector<16x128xf32>
    %15 = tpu.matmul %13, %14, %cst_18 {dimension_numbers = #tpu.dot_dimension_numbers<[1], [0], [0], [1], [0, 0, 1, 1], [], []>} : vector<16x16xbf16>, vector<16x128xbf16>, vector<16x128xf32> -> vector<16x128xf32>
    %16 = arith.truncf %15 : vector<16x128xf32> to vector<16x128xbf16>
    %c0_19 = arith.constant 0 : index
    %c0_20 = arith.constant 0 : index
    %17 = vector.load %arg6[%c0_19, %c0_20] : memref<128x128xbf16, #tpu.memory_space<vmem>>, vector<128x128xbf16>
    %cst_21 = arith.constant dense<0.000000e+00> : vector<16x128xf32>
    %18 = tpu.matmul %16, %17, %cst_21 {dimension_numbers = #tpu.dot_dimension_numbers<[1], [0], [0], [1], [0, 0, 1, 1], [], []>} : vector<16x128xbf16>, vector<128x128xbf16>, vector<16x128xf32> -> vector<16x128xf32>
    %19 = arith.addf %3, %18 : vector<16x128xf32>
    %cst_22 = arith.constant 0.000000e+00 : f32
    %20 = vector.broadcast %cst_22 : f32 to vector<16x128xf32>
    %21 = arith.maximumf %19, %20 : vector<16x128xf32>
    %22 = arith.truncf %21 : vector<16x128xf32> to vector<16x128xbf16>
    %c0_23 = arith.constant 0 : index
    %c0_24 = arith.constant 0 : index
    %23 = vector.load %arg16[%c0_23, %c0_24] : memref<16x128xbf16, #tpu.memory_space<vmem>>, vector<16x128xbf16>
    tpu.vector_store %arg16[%c0_23, %c0_24], %22 {strides = array<i32>} : memref<16x128xbf16, #tpu.memory_space<vmem>>, vector<16x128xbf16>,
    %c0_25 = arith.constant 0 : index
    %c0_26 = arith.constant 0 : index
    %c0_27 = arith.constant 0 : index
    %24 = vector.load %arg3[%c0_25, %c0_26, %c0_27] : memref<1x16x16xbf16, #tpu.memory_space<vmem>>, vector<1x16x16xbf16>
    %25 = vector.shape_cast %24 : vector<1x16x16xbf16> to vector<16x16xbf16>
    %c0_28 = arith.constant 0 : index
    %c0_29 = arith.constant 0 : index
    %26 = vector.load %arg16[%c0_28, %c0_29] : memref<16x128xbf16, #tpu.memory_space<vmem>>, vector<16x128xbf16>
    %cst_30 = arith.constant dense<0.000000e+00> : vector<16x128xf32>
    %27 = tpu.matmul %25, %26, %cst_30 {dimension_numbers = #tpu.dot_dimension_numbers<[1], [0], [0], [1], [0, 0, 1, 1], [], []>} : vector<16x16xbf16>, vector<16x128xbf16>, vector<16x128xf32> -> vector<16x128xf32>
    %28 = arith.truncf %27 : vector<16x128xf32> to vector<16x128xbf16>
    %c0_31 = arith.constant 0 : index
    %c0_32 = arith.constant 0 : index
    %29 = vector.load %arg6[%c0_31, %c0_32] : memref<128x128xbf16, #tpu.memory_space<vmem>>, vector<128x128xbf16>
    %cst_33 = arith.constant dense<0.000000e+00> : vector<16x128xf32>
    %30 = tpu.matmul %28, %29, %cst_33 {dimension_numbers = #tpu.dot_dimension_numbers<[1], [0], [0], [1], [0, 0, 1, 1], [], []>} : vector<16x128xbf16>, vector<128x128xbf16>, vector<16x128xf32> -> vector<16x128xf32>
    %31 = arith.addf %3, %30 : vector<16x128xf32>
    %cst_34 = arith.constant 0.000000e+00 : f32
    %32 = vector.broadcast %cst_34 : f32 to vector<16x128xf32>
    %33 = arith.maximumf %31, %32 : vector<16x128xf32>
    %34 = arith.truncf %33 : vector<16x128xf32> to vector<16x128xbf16>
    %c0_35 = arith.constant 0 : index
    %c0_36 = arith.constant 0 : index
    %35 = vector.load %arg16[%c0_35, %c0_36] : memref<16x128xbf16, #tpu.memory_space<vmem>>, vector<16x128xbf16>
    tpu.vector_store %arg16[%c0_35, %c0_36], %34 {strides = array<i32>} : memref<16x128xbf16, #tpu.memory_space<vmem>>, vector<16x128xbf16>,
    %c0_37 = arith.constant 0 : index
    %c0_38 = arith.constant 0 : index
    %c0_39 = arith.constant 0 : index
    %36 = vector.load %arg4[%c0_37, %c0_38, %c0_39] : memref<1x8x16xbf16, #tpu.memory_space<vmem>>, vector<1x8x16xbf16>
    %37 = vector.shape_cast %36 : vector<1x8x16xbf16> to vector<8x16xbf16>
    %c0_40 = arith.constant 0 : index
    %c0_41 = arith.constant 0 : index
    %38 = vector.load %arg16[%c0_40, %c0_41] : memref<16x128xbf16, #tpu.memory_space<vmem>>, vector<16x128xbf16>
    %cst_42 = arith.constant dense<0.000000e+00> : vector<8x128xf32>
    %39 = tpu.matmul %37, %38, %cst_42 {dimension_numbers = #tpu.dot_dimension_numbers<[1], [0], [0], [1], [0, 0, 1, 1], [], []>} : vector<8x16xbf16>, vector<16x128xbf16>, vector<8x128xf32> -> vector<8x128xf32>
    %40 = arith.truncf %39 : vector<8x128xf32> to vector<8x128xbf16>
    %c0_43 = arith.constant 0 : index
    %c0_44 = arith.constant 0 : index
    %41 = vector.load %arg8[%c0_43, %c0_44] : memref<128x128xbf16, #tpu.memory_space<vmem>>, vector<128x128xbf16>
    %cst_45 = arith.constant dense<0.000000e+00> : vector<8x128xf32>
    %42 = tpu.matmul %40, %41, %cst_45 {dimension_numbers = #tpu.dot_dimension_numbers<[1], [0], [0], [1], [0, 0, 1, 1], [], []>} : vector<8x128xbf16>, vector<128x128xbf16>, vector<8x128xf32> -> vector<8x128xf32>
    %43 = arith.addf %11, %42 : vector<8x128xf32>
    %c0_46 = arith.constant 0 : index
    %c0_47 = arith.constant 0 : index
    %44 = vector.load %arg9[%c0_46, %c0_47] : memref<1x128xf32, #tpu.memory_space<vmem>>, vector<1x128xf32>
    %45 = vector.broadcast %44 : vector<1x128xf32> to vector<8x128xf32>
    %46 = arith.addf %43, %45 : vector<8x128xf32>
    %cst_48 = arith.constant 0.000000e+00 : f32
    %47 = vector.broadcast %cst_48 : f32 to vector<8x128xf32>
    %48 = arith.maximumf %46, %47 : vector<8x128xf32>
    %49 = arith.truncf %48 : vector<8x128xf32> to vector<8x128xbf16>
    %c0_49 = arith.constant 0 : index
    %c0_50 = arith.constant 0 : index
    %c0_51 = arith.constant 0 : index
    %50 = vector.load %arg12[%c0_49, %c0_50, %c0_51] : memref<1x8x128xf32, #tpu.memory_space<vmem>>, vector<1x8x128xf32>
    %51 = vector.shape_cast %50 : vector<1x8x128xf32> to vector<8x128xf32>
    %c0_52 = arith.constant 0 : index
    %c0_53 = arith.constant 0 : index
    %c0_54 = arith.constant 0 : index
    %52 = vector.load %arg10[%c0_52, %c0_53, %c0_54] : memref<1x8x8xbf16, #tpu.memory_space<vmem>>, vector<1x8x8xbf16>
    %53 = vector.shape_cast %52 : vector<1x8x8xbf16> to vector<8x8xbf16>
    %cst_55 = arith.constant dense<0.000000e+00> : vector<8x128xf32>
    %54 = tpu.matmul %53, %49, %cst_55 {dimension_numbers = #tpu.dot_dimension_numbers<[1], [0], [0], [1], [0, 0, 1, 1], [], []>} : vector<8x8xbf16>, vector<8x128xbf16>, vector<8x128xf32> -> vector<8x128xf32>
    %55 = arith.mulf %51, %54 : vector<8x128xf32>
    %c0_56 = arith.constant 0 : index
    %c0_57 = arith.constant 0 : index
    %c0_58 = arith.constant 0 : index
    %56 = vector.load %arg14[%c0_56, %c0_57, %c0_58] : memref<1x8x128xf32, #tpu.memory_space<vmem>>, vector<1x8x128xf32>
    %57 = vector.shape_cast %56 : vector<1x8x128xf32> to vector<8x128xf32>
    %58 = vector.shape_cast %55 : vector<8x128xf32> to vector<1x8x128xf32>
    tpu.vector_store %arg14[%c0_56, %c0_57, %c0_58], %58 {strides = array<i32>} : memref<1x8x128xf32, #tpu.memory_space<vmem>>, vector<1x8x128xf32>,
    %c0_59 = arith.constant 0 : index
    %c0_60 = arith.constant 0 : index
    %c0_61 = arith.constant 0 : index
    %59 = vector.load %arg13[%c0_59, %c0_60, %c0_61] : memref<1x16x128xf32, #tpu.memory_space<vmem>>, vector<1x16x128xf32>
    %60 = vector.shape_cast %59 : vector<1x16x128xf32> to vector<16x128xf32>
    %c0_62 = arith.constant 0 : index
    %c0_63 = arith.constant 0 : index
    %c0_64 = arith.constant 0 : index
    %61 = vector.load %arg11[%c0_62, %c0_63, %c0_64] : memref<1x16x8xbf16, #tpu.memory_space<vmem>>, vector<1x16x8xbf16>
    %62 = vector.shape_cast %61 : vector<1x16x8xbf16> to vector<16x8xbf16>
    %cst_65 = arith.constant dense<0.000000e+00> : vector<16x128xf32>
    %63 = tpu.matmul %62, %49, %cst_65 {dimension_numbers = #tpu.dot_dimension_numbers<[1], [0], [0], [1], [0, 0, 1, 1], [], []>} : vector<16x8xbf16>, vector<8x128xbf16>, vector<16x128xf32> -> vector<16x128xf32>
    %64 = arith.mulf %60, %63 : vector<16x128xf32>
    %c0_66 = arith.constant 0 : index
    %c0_67 = arith.constant 0 : index
    %c0_68 = arith.constant 0 : index
    %65 = vector.load %arg15[%c0_66, %c0_67, %c0_68] : memref<1x16x128xf32, #tpu.memory_space<vmem>>, vector<1x16x128xf32>
    %66 = vector.shape_cast %65 : vector<1x16x128xf32> to vector<16x128xf32>
    %67 = vector.shape_cast %64 : vector<16x128xf32> to vector<1x16x128xf32>
    tpu.vector_store %arg15[%c0_66, %c0_67, %c0_68], %67 {strides = array<i32>} : memref<1x16x128xf32, #tpu.memory_space<vmem>>, vector<1x16x128xf32>,
    return
  }
  func.func @transform_0(%arg0: i32) -> (i32, i32, i32) {
    %c0_i32 = arith.constant 0 : i32
    %c0_i32_0 = arith.constant 0 : i32
    %c0_i32_1 = arith.constant 0 : i32
    return %arg0, %c0_i32, %c0_i32_0 : i32, i32, i32
  }
  func.func @transform_1(%arg0: i32) -> (i32, i32, i32) {
    %c0_i32 = arith.constant 0 : i32
    %c0_i32_0 = arith.constant 0 : i32
    %c0_i32_1 = arith.constant 0 : i32
    return %arg0, %c0_i32, %c0_i32_0 : i32, i32, i32
  }
  func.func @transform_2(%arg0: i32) -> (i32, i32, i32) {
    %c0_i32 = arith.constant 0 : i32
    %c0_i32_0 = arith.constant 0 : i32
    %c0_i32_1 = arith.constant 0 : i32
    return %arg0, %c0_i32, %c0_i32_0 : i32, i32, i32
  }
  func.func @transform_3(%arg0: i32) -> (i32, i32, i32) {
    %c0_i32 = arith.constant 0 : i32
    %c0_i32_0 = arith.constant 0 : i32
    %c0_i32_1 = arith.constant 0 : i32
    return %arg0, %c0_i32, %c0_i32_0 : i32, i32, i32
  }
  func.func @transform_4(%arg0: i32) -> (i32, i32) {
    %c0_i32 = arith.constant 0 : i32
    %c0_i32_0 = arith.constant 0 : i32
    %c0_i32_1 = arith.constant 0 : i32
    return %c0_i32, %c0_i32_0 : i32, i32
  }
  func.func @transform_5(%arg0: i32) -> (i32, i32) {
    %c0_i32 = arith.constant 0 : i32
    %c0_i32_0 = arith.constant 0 : i32
    %c0_i32_1 = arith.constant 0 : i32
    return %c0_i32, %c0_i32_0 : i32, i32
  }
  func.func @transform_6(%arg0: i32) -> (i32, i32) {
    %c0_i32 = arith.constant 0 : i32
    %c0_i32_0 = arith.constant 0 : i32
    %c0_i32_1 = arith.constant 0 : i32
    return %c0_i32, %c0_i32_0 : i32, i32
  }
  func.func @transform_7(%arg0: i32) -> (i32, i32) {
    %c0_i32 = arith.constant 0 : i32
    %c0_i32_0 = arith.constant 0 : i32
    %c0_i32_1 = arith.constant 0 : i32
    return %c0_i32, %c0_i32_0 : i32, i32
  }
  func.func @transform_8(%arg0: i32) -> (i32, i32) {
    %c0_i32 = arith.constant 0 : i32
    %c0_i32_0 = arith.constant 0 : i32
    %c0_i32_1 = arith.constant 0 : i32
    return %c0_i32, %c0_i32_0 : i32, i32
  }
  func.func @transform_9(%arg0: i32) -> (i32, i32, i32) {
    %c0_i32 = arith.constant 0 : i32
    %c0_i32_0 = arith.constant 0 : i32
    %c0_i32_1 = arith.constant 0 : i32
    return %arg0, %c0_i32, %c0_i32_0 : i32, i32, i32
  }
  func.func @transform_10(%arg0: i32) -> (i32, i32, i32) {
    %c0_i32 = arith.constant 0 : i32
    %c0_i32_0 = arith.constant 0 : i32
    %c0_i32_1 = arith.constant 0 : i32
    return %arg0, %c0_i32, %c0_i32_0 : i32, i32, i32
  }
  func.func @transform_11(%arg0: i32) -> (i32, i32, i32) {
    %c0_i32 = arith.constant 0 : i32
    %c0_i32_0 = arith.constant 0 : i32
    %c0_i32_1 = arith.constant 0 : i32
    return %arg0, %c0_i32, %c0_i32_0 : i32, i32, i32
  }
  func.func @transform_12(%arg0: i32) -> (i32, i32, i32) {
    %c0_i32 = arith.constant 0 : i32
    %c0_i32_0 = arith.constant 0 : i32
    %c0_i32_1 = arith.constant 0 : i32
    return %arg0, %c0_i32, %c0_i32_0 : i32, i32, i32
  }
  func.func @transform_13(%arg0: i32) -> (i32, i32, i32) {
    %c0_i32 = arith.constant 0 : i32
    %c0_i32_0 = arith.constant 0 : i32
    %c0_i32_1 = arith.constant 0 : i32
    return %arg0, %c0_i32, %c0_i32_0 : i32, i32, i32
  }
  func.func @transform_14(%arg0: i32) -> (i32, i32, i32) {
    %c0_i32 = arith.constant 0 : i32
    %c0_i32_0 = arith.constant 0 : i32
    %c0_i32_1 = arith.constant 0 : i32
    return %arg0, %c0_i32, %c0_i32_0 : i32, i32, i32
  }
}

</mosaic_0001>

<llo_original>
// kernel: tpu_custom_call.1
$region0: #{tpu_custom_call.1}
  #allocation0 [shape = 'u32[]', space=smem, size = 0x4, offset = 0x4, fixed_abs, tag = 'smem constant byte address 0x4 - core index']
  #allocation1 [shape = 'u32[72,128]{1,0:T(1,128)}', space=vmem, size = 0x9000, scoped, tag = 'internal scratch']
  #allocation2 [shape = 'bf16[16,128]{1,0:T(8,128)(2,1)}', space=vmem, size = 0x1000, scoped, tag = 'scratch operand']
  %s0 = inlined_call_operand.hbm [shape: bf16[2,16,128], index: 0, kind: input, shape index: {}]
  %s1 = inlined_call_operand.hbm [shape: bf16[2,8,128], index: 1, kind: input, shape index: {}]
  %s2 = inlined_call_operand.hbm [shape: bf16[2,16,16], index: 2, kind: input, shape index: {}]
  %s3 = inlined_call_operand.hbm [shape: bf16[2,8,16], index: 3, kind: input, shape index: {}]
  %s4 = inlined_call_operand.hbm [shape: bf16[128,128], index: 4, kind: input, shape index: {}]
  %s5 = inlined_call_operand.hbm [shape: bf16[128,128], index: 5, kind: input, shape index: {}]
  %s6 = inlined_call_operand.hbm [shape: bf16[128,128], index: 6, kind: input, shape index: {}]
  %s7 = inlined_call_operand.hbm [shape: bf16[128,128], index: 7, kind: input, shape index: {}]
  %s8 = inlined_call_operand.vmem [shape: f32[1,128], index: 8, kind: input, shape index: {}]
  %s9 = inlined_call_operand.hbm [shape: bf16[2,8,8], index: 9, kind: input, shape index: {}]
  %s10 = inlined_call_operand.vmem [shape: bf16[2,16,8], index: 10, kind: input, shape index: {}]
  %s11 = inlined_call_operand.hbm [shape: f32[2,8,128], index: 11, kind: input, shape index: {}]
  %s12 = inlined_call_operand.vmem [shape: f32[2,16,128], index: 12, kind: input, shape index: {}]
  %s13 = inlined_call_operand.hbm [shape: f32[2,8,128], index: 13, kind: output, shape index: {0}]
  %s14 = inlined_call_operand.hbm [shape: f32[2,16,128], index: 14, kind: output, shape index: {1}]
  %15 = xla_tuple %s13, %s14
  %s16 = sld [smem:[#allocation0]]
  $region133: #{tpu_custom_call.1} parent=0
    _
  %s18 = ssub.s32 1, %s16
  %s19 = scalar_select 0, %s18, %s16
  $region1: #{tpu_custom_call.1} parent=0
    #allocation3 [shape = 'u8[8192]{0}', space=vmem, size = 0x2000, scoped, tag = 'input window, operand 0']
    #allocation4 [shape = 's32[2]{0}', space=sflag, size = 0x8, scoped, tag = 'scoped memory for tpu_custom_call.1']
    #allocation5 [shape = 's32[2]{0}', space=sflag, size = 0x8, scoped, tag = 'scoped memory for tpu_custom_call.1']
    #allocation6 [shape = 'u8[4096]{0}', space=vmem, size = 0x1000, scoped, tag = 'input window, operand 1']
    #allocation7 [shape = 's32[2]{0}', space=sflag, size = 0x8, scoped, tag = 'scoped memory for tpu_custom_call.1']
    #allocation8 [shape = 'u8[8192]{0}', space=vmem, size = 0x2000, scoped, tag = 'input window, operand 2']
    #allocation9 [shape = 'u8[4096]{0}', space=vmem, size = 0x1000, scoped, tag = 'input window, operand 3']
    #allocation10 [shape = 's32[2]{0}', space=sflag, size = 0x8, scoped, tag = 'scoped memory for tpu_custom_call.1']
    #allocation11 [shape = 'u8[32768]{0}', space=vmem, size = 0x8000, scoped, tag = 'input window, operand 4, single buffered']
    #allocation12 [shape = 'u8[32768]{0}', space=vmem, size = 0x8000, scoped, tag = 'input window, operand 5, single buffered']
    #allocation13 [shape = 's32[1]{0}', space=sflag, size = 0x4, scoped, tag = 'scoped memory for tpu_custom_call.1']
    #allocation14 [shape = 'u8[32768]{0}', space=vmem, size = 0x8000, scoped, tag = 'input window, operand 6, single buffered']
    #allocation15 [shape = 'u8[32768]{0}', space=vmem, size = 0x8000, scoped, tag = 'input window, operand 7, single buffered']
    #allocation16 [shape = 's32[1]{0}', space=sflag, size = 0x4, scoped, tag = 'scoped memory for tpu_custom_call.1']
    #allocation17 [shape = 'u8[4096]{0}', space=vmem, size = 0x1000, scoped, tag = 'input window, operand 9']
    #allocation18 [shape = 'u8[8192]{0}', space=vmem, size = 0x2000, scoped, tag = 'input window, operand 11']
    #allocation19 [shape = 'u8[8192]{0}', space=vmem, size = 0x2000, scoped, tag = 'output window, operand 0']
    #allocation20 [shape = 'u8[16384]{0}', space=vmem, size = 0x4000, scoped, tag = 'output window, operand 1']
    #allocation21 [shape = 's32[2]{0}', space=sflag, size = 0x8, scoped, tag = 'scoped memory for tpu_custom_call.1']
    %20 = vsyncpa [#allocation4], 0
    %s21 = scalar_lea.sflag [#allocation4], 1
    %22 = vsyncpa %s21, 0
    %23 = vsyncpa [#allocation7], 0
    %s24 = scalar_lea.sflag [#allocation7], 1
    %25 = vsyncpa %s24, 0
    %26 = vsyncpa [#allocation10], 0
    %s27 = scalar_lea.sflag [#allocation10], 1
    %28 = vsyncpa %s27, 0
    %29 = vsyncpa [#allocation13], 0
    %30 = vsyncpa [#allocation16], 0
    %31 = vsyncpa [#allocation5], 0
    %s32 = scalar_lea.sflag [#allocation5], 1
    %33 = vsyncpa %s32, 0
    %34 = vsyncpa [#allocation21], 0
    %s35 = scalar_lea.sflag [#allocation21], 1
    %36 = vsyncpa %s35, 0
    loop: start=0, step=1, limit=4
    $region2: #{tpu_custom_call.1} parent=1 // loop_pre_header
      _
    $region3: #{tpu_custom_call.1} parent=1 // loop_header
      %s38 = sphi 0, %s42
      %p39 = scmp.ge.s32.totalorder %s38, 4
      %s48 = sphi 0, %s50
      %s51 = sphi 0, %s48
      %s52 = sphi 0, %s51
      %s68 = sphi 0, %s52
      %s74 = sphi 0, %s76
      %s77 = sphi 0, %s74
      %s78 = sphi 0, %s77
      %s94 = sphi 0, %s78
      %s100 = sphi 0, %s102
      %s103 = sphi 0, %s100
      %s104 = sphi 0, %s103
      %s120 = sphi 0, %s104
      %s126 = sphi 0, %s128
      %s129 = sphi 0, %s126
      %s130 = sphi 0, %s129
      %s146 = sphi 0, %s130
      %s150 = sphi 0, %s150
      %s152 = sphi 0, %s150
      %s153 = sphi 0, %s152
      %s167 = sphi 0, %s153
      %s171 = sphi 0, %s171
      %s173 = sphi 0, %s171
      %s174 = sphi 0, %s173
      %s188 = sphi 0, %s174
      %s192 = sphi 0, %s192
      %s194 = sphi 0, %s192
      %s195 = sphi 0, %s194
      %s209 = sphi 0, %s195
      %s213 = sphi 0, %s213
      %s215 = sphi 0, %s213
      %s216 = sphi 0, %s215
      %s230 = sphi 0, %s216
      %s234 = sphi 0, %s234
      %s236 = sphi 0, %s234
      %s237 = sphi 0, %s236
      %s251 = sphi 0, %s237
      %s257 = sphi 0, %s259
      %s260 = sphi 0, %s257
      %s261 = sphi 0, %s260
      %s277 = sphi 0, %s261
      %s283 = sphi 0, %s285
      %s286 = sphi 0, %s283
      %s287 = sphi 0, %s286
      %s303 = sphi 0, %s287
      %s309 = sphi 0, %s311
      %s312 = sphi 0, %s309
      %s313 = sphi 0, %s312
      %s329 = sphi 0, %s313
      %s335 = sphi 0, %s337
      %s338 = sphi 0, %s335
      %s339 = sphi 0, %s338
      %s355 = sphi 0, %s339
      %s361 = sphi 0, %s363
      %s364 = sphi 0, %s361
      %s365 = sphi 0, %s364
      %s381 = sphi 0, %s365
      %s387 = sphi 0, %s389
      %s390 = sphi 0, %s387
      %s391 = sphi 0, %s390
      %s407 = sphi 0, %s391
    $region4: #{tpu_custom_call.1} parent=1 // loop_header_branch
      %41 = sbr.rel (%p39) target = $region8
    $region5: #{tpu_custom_call.1} parent=1 // loop_body
      %s43 = ssub.s32 %s38, 1
      %s44 = ssub.s32 %s38, 2
      %s45 = sadd.s32 %s38, 1
      %s46 = ssub.s32 %s38, %s45
      %p47 = scmp.eq.s32.totalorder %s46, 0
      %s49 = sadd.s32 %s48, 1
      %s50 = scalar_select %p47, %s48, %s49
      %p53 = pneg %p47
      %p54 = scmp.eq.s32.totalorder %s38, 1
      %p55 = por %p53, %p54
      %p56 = scmp.ne.s32.totalorder %s48, %s51
      %p57 = scmp.eq.s32.totalorder %s38, 0
      %p58 = por %p56, %p57
      %p59 = scmp.ne.s32.totalorder %s48, %s51
      %p60 = scmp.eq.s32.totalorder %s43, 1
      %p61 = por %p59, %p60
      %p62 = scmp.ne.s32.totalorder %s51, %s52
      %p63 = scmp.eq.s32.totalorder %s43, 0
      %p64 = por %p62, %p63
      %p65 = scmp.ne.s32.totalorder %s51, %s52
      %p66 = scmp.eq.s32.totalorder %s44, 1
      %p67 = por %p65, %p66
      %p69 = scmp.ne.s32.totalorder %s52, %s68
      %p70 = scmp.eq.s32.totalorder %s44, 0
      %p71 = por %p69, %p70
      %s72 = ssub.s32 %s38, %s45
      %p73 = scmp.eq.s32.totalorder %s72, 0
      %s75 = sadd.s32 %s74, 1
      %s76 = scalar_select %p73, %s74, %s75
      %p79 = pneg %p73
      %p80 = scmp.eq.s32.totalorder %s38, 1
      %p81 = por %p79, %p80
      %p82 = scmp.ne.s32.totalorder %s74, %s77
      %p83 = scmp.eq.s32.totalorder %s38, 0
      %p84 = por %p82, %p83
      %p85 = scmp.ne.s32.totalorder %s74, %s77
      %p86 = scmp.eq.s32.totalorder %s43, 1
      %p87 = por %p85, %p86
      %p88 = scmp.ne.s32.totalorder %s77, %s78
      %p89 = scmp.eq.s32.totalorder %s43, 0
      %p90 = por %p88, %p89
      %p91 = scmp.ne.s32.totalorder %s77, %s78
      %p92 = scmp.eq.s32.totalorder %s44, 1
      %p93 = por %p91, %p92
      %p95 = scmp.ne.s32.totalorder %s78, %s94
      %p96 = scmp.eq.s32.totalorder %s44, 0
      %p97 = por %p95, %p96
      %s98 = ssub.s32 %s38, %s45
      %p99 = scmp.eq.s32.totalorder %s98, 0
      %s101 = sadd.s32 %s100, 1
      %s102 = scalar_select %p99, %s100, %s101
      %p105 = pneg %p99
      %p106 = scmp.eq.s32.totalorder %s38, 1
      %p107 = por %p105, %p106
      %p108 = scmp.ne.s32.totalorder %s100, %s103
      %p109 = scmp.eq.s32.totalorder %s38, 0
      %p110 = por %p108, %p109
      %p111 = scmp.ne.s32.totalorder %s100, %s103
      %p112 = scmp.eq.s32.totalorder %s43, 1
      %p113 = por %p111, %p112
      %p114 = scmp.ne.s32.totalorder %s103, %s104
      %p115 = scmp.eq.s32.totalorder %s43, 0
      %p116 = por %p114, %p115
      %p117 = scmp.ne.s32.totalorder %s103, %s104
      %p118 = scmp.eq.s32.totalorder %s44, 1
      %p119 = por %p117, %p118
      %p121 = scmp.ne.s32.totalorder %s104, %s120
      %p122 = scmp.eq.s32.totalorder %s44, 0
      %p123 = por %p121, %p122
      %s124 = ssub.s32 %s38, %s45
      %p125 = scmp.eq.s32.totalorder %s124, 0
      %s127 = sadd.s32 %s126, 1
      %s128 = scalar_select %p125, %s126, %s127
      %p131 = pneg %p125
      %p132 = scmp.eq.s32.totalorder %s38, 1
      %p133 = por %p131, %p132
      %p134 = scmp.ne.s32.totalorder %s126, %s129
      %p135 = scmp.eq.s32.totalorder %s38, 0
      %p136 = por %p134, %p135
      %p137 = scmp.ne.s32.totalorder %s126, %s129
      %p138 = scmp.eq.s32.totalorder %s43, 1
      %p139 = por %p137, %p138
      %p140 = scmp.ne.s32.totalorder %s129, %s130
      %p141 = scmp.eq.s32.totalorder %s43, 0
      %p142 = por %p140, %p141
      %p143 = scmp.ne.s32.totalorder %s129, %s130
      %p144 = scmp.eq.s32.totalorder %s44, 1
      %p145 = por %p143, %p144
      %p147 = scmp.ne.s32.totalorder %s130, %s146
      %p148 = scmp.eq.s32.totalorder %s44, 0
      %p149 = por %p147, %p148
      %s151 = sadd.s32 %s150, 1
      %p154 = scmp.eq.s32.totalorder %s38, 1
      %p155 = scmp.ne.s32.totalorder %s150, %s152
      %p156 = scmp.eq.s32.totalorder %s38, 0
      %p157 = por %p155, %p156
      %p158 = scmp.ne.s32.totalorder %s150, %s152
      %p159 = scmp.eq.s32.totalorder %s43, 1
      %p160 = por %p158, %p159
      %p161 = scmp.ne.s32.totalorder %s152, %s153
      %p162 = scmp.eq.s32.totalorder %s43, 0
      %p163 = por %p161, %p162
      %p164 = scmp.ne.s32.totalorder %s152, %s153
      %p165 = scmp.eq.s32.totalorder %s44, 1
      %p166 = por %p164, %p165
      %p168 = scmp.ne.s32.totalorder %s153, %s167
      %p169 = scmp.eq.s32.totalorder %s44, 0
      %p170 = por %p168, %p169
      %s172 = sadd.s32 %s171, 1
      %p175 = scmp.eq.s32.totalorder %s38, 1
      %p176 = scmp.ne.s32.totalorder %s171, %s173
      %p177 = scmp.eq.s32.totalorder %s38, 0
      %p178 = por %p176, %p177
      %p179 = scmp.ne.s32.totalorder %s171, %s173
      %p180 = scmp.eq.s32.totalorder %s43, 1
      %p181 = por %p179, %p180
      %p182 = scmp.ne.s32.totalorder %s173, %s174
      %p183 = scmp.eq.s32.totalorder %s43, 0
      %p184 = por %p182, %p183
      %p185 = scmp.ne.s32.totalorder %s173, %s174
      %p186 = scmp.eq.s32.totalorder %s44, 1
      %p187 = por %p185, %p186
      %p189 = scmp.ne.s32.totalorder %s174, %s188
      %p190 = scmp.eq.s32.totalorder %s44, 0
      %p191 = por %p189, %p190
      %s193 = sadd.s32 %s192, 1
      %p196 = scmp.eq.s32.totalorder %s38, 1
      %p197 = scmp.ne.s32.totalorder %s192, %s194
      %p198 = scmp.eq.s32.totalorder %s38, 0
      %p199 = por %p197, %p198
      %p200 = scmp.ne.s32.totalorder %s192, %s194
      %p201 = scmp.eq.s32.totalorder %s43, 1
      %p202 = por %p200, %p201
      %p203 = scmp.ne.s32.totalorder %s194, %s195
      %p204 = scmp.eq.s32.totalorder %s43, 0
      %p205 = por %p203, %p204
      %p206 = scmp.ne.s32.totalorder %s194, %s195
      %p207 = scmp.eq.s32.totalorder %s44, 1
      %p208 = por %p206, %p207
      %p210 = scmp.ne.s32.totalorder %s195, %s209
      %p211 = scmp.eq.s32.totalorder %s44, 0
      %p212 = por %p210, %p211
      %s214 = sadd.s32 %s213, 1
      %p217 = scmp.eq.s32.totalorder %s38, 1
      %p218 = scmp.ne.s32.totalorder %s213, %s215
      %p219 = scmp.eq.s32.totalorder %s38, 0
      %p220 = por %p218, %p219
      %p221 = scmp.ne.s32.totalorder %s213, %s215
      %p222 = scmp.eq.s32.totalorder %s43, 1
      %p223 = por %p221, %p222
      %p224 = scmp.ne.s32.totalorder %s215, %s216
      %p225 = scmp.eq.s32.totalorder %s43, 0
      %p226 = por %p224, %p225
      %p227 = scmp.ne.s32.totalorder %s215, %s216
      %p228 = scmp.eq.s32.totalorder %s44, 1
      %p229 = por %p227, %p228
      %p231 = scmp.ne.s32.totalorder %s216, %s230
      %p232 = scmp.eq.s32.totalorder %s44, 0
      %p233 = por %p231, %p232
      %s235 = sadd.s32 %s234, 1
      %p238 = scmp.eq.s32.totalorder %s38, 1
      %p239 = scmp.ne.s32.totalorder %s234, %s236
      %p240 = scmp.eq.s32.totalorder %s38, 0
      %p241 = por %p239, %p240
      %p242 = scmp.ne.s32.totalorder %s234, %s236
      %p243 = scmp.eq.s32.totalorder %s43, 1
      %p244 = por %p242, %p243
      %p245 = scmp.ne.s32.totalorder %s236, %s237
      %p246 = scmp.eq.s32.totalorder %s43, 0
      %p247 = por %p245, %p246
      %p248 = scmp.ne.s32.totalorder %s236, %s237
      %p249 = scmp.eq.s32.totalorder %s44, 1
      %p250 = por %p248, %p249
      %p252 = scmp.ne.s32.totalorder %s237, %s251
      %p253 = scmp.eq.s32.totalorder %s44, 0
      %p254 = por %p252, %p253
      %s255 = ssub.s32 %s38, %s45
      %p256 = scmp.eq.s32.totalorder %s255, 0
      %s258 = sadd.s32 %s257, 1
      %s259 = scalar_select %p256, %s257, %s258
      %p262 = pneg %p256
      %p263 = scmp.eq.s32.totalorder %s38, 1
      %p264 = por %p262, %p263
      %p265 = scmp.ne.s32.totalorder %s257, %s260
      %p266 = scmp.eq.s32.totalorder %s38, 0
      %p267 = por %p265, %p266
      %p268 = scmp.ne.s32.totalorder %s257, %s260
      %p269 = scmp.eq.s32.totalorder %s43, 1
      %p270 = por %p268, %p269
      %p271 = scmp.ne.s32.totalorder %s260, %s261
      %p272 = scmp.eq.s32.totalorder %s43, 0
      %p273 = por %p271, %p272
      %p274 = scmp.ne.s32.totalorder %s260, %s261
      %p275 = scmp.eq.s32.totalorder %s44, 1
      %p276 = por %p274, %p275
      %p278 = scmp.ne.s32.totalorder %s261, %s277
      %p279 = scmp.eq.s32.totalorder %s44, 0
      %p280 = por %p278, %p279
      %s281 = ssub.s32 %s38, %s45
      %p282 = scmp.eq.s32.totalorder %s281, 0
      %s284 = sadd.s32 %s283, 1
      %s285 = scalar_select %p282, %s283, %s284
      %p288 = pneg %p282
      %p289 = scmp.eq.s32.totalorder %s38, 1
      %p290 = por %p288, %p289
      %p291 = scmp.ne.s32.totalorder %s283, %s286
      %p292 = scmp.eq.s32.totalorder %s38, 0
      %p293 = por %p291, %p292
      %p294 = scmp.ne.s32.totalorder %s283, %s286
      %p295 = scmp.eq.s32.totalorder %s43, 1
      %p296 = por %p294, %p295
      %p297 = scmp.ne.s32.totalorder %s286, %s287
      %p298 = scmp.eq.s32.totalorder %s43, 0
      %p299 = por %p297, %p298
      %p300 = scmp.ne.s32.totalorder %s286, %s287
      %p301 = scmp.eq.s32.totalorder %s44, 1
      %p302 = por %p300, %p301
      %p304 = scmp.ne.s32.totalorder %s287, %s303
      %p305 = scmp.eq.s32.totalorder %s44, 0
      %p306 = por %p304, %p305
      %s307 = ssub.s32 %s38, %s45
      %p308 = scmp.eq.s32.totalorder %s307, 0
      %s310 = sadd.s32 %s309, 1
      %s311 = scalar_select %p308, %s309, %s310
      %p314 = pneg %p308
      %p315 = scmp.eq.s32.totalorder %s38, 1
      %p316 = por %p314, %p315
      %p317 = scmp.ne.s32.totalorder %s309, %s312
      %p318 = scmp.eq.s32.totalorder %s38, 0
      %p319 = por %p317, %p318
      %p320 = scmp.ne.s32.totalorder %s309, %s312
      %p321 = scmp.eq.s32.totalorder %s43, 1
      %p322 = por %p320, %p321
      %p323 = scmp.ne.s32.totalorder %s312, %s313
      %p324 = scmp.eq.s32.totalorder %s43, 0
      %p325 = por %p323, %p324
      %p326 = scmp.ne.s32.totalorder %s312, %s313
      %p327 = scmp.eq.s32.totalorder %s44, 1
      %p328 = por %p326, %p327
      %p330 = scmp.ne.s32.totalorder %s313, %s329
      %p331 = scmp.eq.s32.totalorder %s44, 0
      %p332 = por %p330, %p331
      %s333 = ssub.s32 %s38, %s45
      %p334 = scmp.eq.s32.totalorder %s333, 0
      %s336 = sadd.s32 %s335, 1
      %s337 = scalar_select %p334, %s335, %s336
      %p340 = pneg %p334
      %p341 = scmp.eq.s32.totalorder %s38, 1
      %p342 = por %p340, %p341
      %p343 = scmp.ne.s32.totalorder %s335, %s338
      %p344 = scmp.eq.s32.totalorder %s38, 0
      %p345 = por %p343, %p344
      %p346 = scmp.ne.s32.totalorder %s335, %s338
      %p347 = scmp.eq.s32.totalorder %s43, 1
      %p348 = por %p346, %p347
      %p349 = scmp.ne.s32.totalorder %s338, %s339
      %p350 = scmp.eq.s32.totalorder %s43, 0
      %p351 = por %p349, %p350
      %p352 = scmp.ne.s32.totalorder %s338, %s339
      %p353 = scmp.eq.s32.totalorder %s44, 1
      %p354 = por %p352, %p353
      %p356 = scmp.ne.s32.totalorder %s339, %s355
      %p357 = scmp.eq.s32.totalorder %s44, 0
      %p358 = por %p356, %p357
      %s359 = ssub.s32 %s38, %s45
      %p360 = scmp.eq.s32.totalorder %s359, 0
      %s362 = sadd.s32 %s361, 1
      %s363 = scalar_select %p360, %s361, %s362
      %p366 = pneg %p360
      %p367 = scmp.eq.s32.totalorder %s38, 1
      %p368 = por %p366, %p367
      %p369 = scmp.ne.s32.totalorder %s361, %s364
      %p370 = scmp.eq.s32.totalorder %s38, 0
      %p371 = por %p369, %p370
      %p372 = scmp.ne.s32.totalorder %s361, %s364
      %p373 = scmp.eq.s32.totalorder %s43, 1
      %p374 = por %p372, %p373
      %p375 = scmp.ne.s32.totalorder %s364, %s365
      %p376 = scmp.eq.s32.totalorder %s43, 0
      %p377 = por %p375, %p376
      %p378 = scmp.ne.s32.totalorder %s364, %s365
      %p379 = scmp.eq.s32.totalorder %s44, 1
      %p380 = por %p378, %p379
      %p382 = scmp.ne.s32.totalorder %s365, %s381
      %p383 = scmp.eq.s32.totalorder %s44, 0
      %p384 = por %p382, %p383
      %s385 = ssub.s32 %s38, %s45
      %p386 = scmp.eq.s32.totalorder %s385, 0
      %s388 = sadd.s32 %s387, 1
      %s389 = scalar_select %p386, %s387, %s388
      %p392 = pneg %p386
      %p393 = scmp.eq.s32.totalorder %s38, 1
      %p394 = por %p392, %p393
      %p395 = scmp.ne.s32.totalorder %s387, %s390
      %p396 = scmp.eq.s32.totalorder %s38, 0
      %p397 = por %p395, %p396
      %p398 = scmp.ne.s32.totalorder %s387, %s390
      %p399 = scmp.eq.s32.totalorder %s43, 1
      %p400 = por %p398, %p399
      %p401 = scmp.ne.s32.totalorder %s390, %s391
      %p402 = scmp.eq.s32.totalorder %s43, 0
      %p403 = por %p401, %p402
      %p404 = scmp.ne.s32.totalorder %s390, %s391
      %p405 = scmp.eq.s32.totalorder %s44, 1
      %p406 = por %p404, %p405
      %p408 = scmp.ne.s32.totalorder %s391, %s407
      %p409 = scmp.eq.s32.totalorder %s44, 0
      %p410 = por %p408, %p409
      %p411 = scmp.le.s32.totalorder 1, %s38
      %p412 = scmp.lt.s32.totalorder %s38, 3
      %p413 = pnand %p411, %p412
      %p414 = pneg %p413
      // Predicated region
      $region9: #{tpu_custom_call.1} parent=5 // pred_check
        _
      $region10: #{tpu_custom_call.1} parent=5 // pred_check_branch
        %416 = sbr.rel (%p413) target = $region12
      $region11: #{tpu_custom_call.1} parent=5 // pred_region
        %s417 = ssub.s32 %s38, 1
        // Predicated region
        $region13: #{tpu_custom_call.1} parent=11 // pred_check
          %p418 = pneg %p163
        $region14: #{tpu_custom_call.1} parent=11 // pred_check_branch
          %420 = sbr.rel (%p418) target = $region16
        $region15: #{tpu_custom_call.1} parent=11 // pred_region
          %422 = vsyncadd [#allocation10], 0
          %s423 = sshll.u32 %s4, 4
          %s424 = int_to_ptr.hbm [resolvable:$true] %s423
          %s425 = sshll.u32 [#allocation11], 4
          %s426 = int_to_ptr.vmem [resolvable:$true] %s425
          %431 = dma.hbm_to_vmem [thread:$0]  %s424, 1024, %s426, [#allocation10], 64, 64, 4
        $region16: #{tpu_custom_call.1} parent=11 // pred_fallthru
          _
        // Predicated region
        $region17: #{tpu_custom_call.1} parent=11 // pred_check
          %p432 = pneg %p184
        $region18: #{tpu_custom_call.1} parent=11 // pred_check_branch
          %434 = sbr.rel (%p432) target = $region20
        $region19: #{tpu_custom_call.1} parent=11 // pred_region
          %436 = vsyncadd [#allocation13], 0
          %s437 = sshll.u32 %s5, 4
          %s438 = int_to_ptr.hbm [resolvable:$true] %s437
          %s439 = sshll.u32 [#allocation12], 4
          %s440 = int_to_ptr.vmem [resolvable:$true] %s439
          %445 = dma.hbm_to_vmem [thread:$0]  %s438, 1024, %s440, [#allocation13], 64, 64, 4
        $region20: #{tpu_custom_call.1} parent=11 // pred_fallthru
          _
        // Predicated region
        $region21: #{tpu_custom_call.1} parent=11 // pred_check
          %p446 = pneg %p205
        $region22: #{tpu_custom_call.1} parent=11 // pred_check_branch
          %448 = sbr.rel (%p446) target = $region24
        $region23: #{tpu_custom_call.1} parent=11 // pred_region
          %450 = vsyncadd [#allocation13], 0
          %s451 = sshll.u32 %s6, 4
          %s452 = int_to_ptr.hbm [resolvable:$true] %s451
          %s453 = sshll.u32 [#allocation14], 4
          %s454 = int_to_ptr.vmem [resolvable:$true] %s453
          %459 = dma.hbm_to_vmem [thread:$0]  %s452, 1024, %s454, [#allocation13], 64, 64, 4
        $region24: #{tpu_custom_call.1} parent=11 // pred_fallthru
          _
        // Predicated region
        $region25: #{tpu_custom_call.1} parent=11 // pred_check
          %p460 = pneg %p226
        $region26: #{tpu_custom_call.1} parent=11 // pred_check_branch
          %462 = sbr.rel (%p460) target = $region28
        $region27: #{tpu_custom_call.1} parent=11 // pred_region
          %464 = vsyncadd [#allocation16], 0
          %s465 = sshll.u32 %s7, 4
          %s466 = int_to_ptr.hbm [resolvable:$true] %s465
          %s467 = sshll.u32 [#allocation15], 4
          %s468 = int_to_ptr.vmem [resolvable:$true] %s467
          %473 = dma.hbm_to_vmem [thread:$0]  %s466, 1024, %s468, [#allocation16], 64, 64, 4
        $region28: #{tpu_custom_call.1} parent=11 // pred_fallthru
          _
        // Predicated region
        $region29: #{tpu_custom_call.1} parent=11 // pred_check
          %p474 = pneg %p247
        $region30: #{tpu_custom_call.1} parent=11 // pred_check_branch
          %476 = sbr.rel (%p474) target = $region32
        $region31: #{tpu_custom_call.1} parent=11 // pred_region
          _
        $region32: #{tpu_custom_call.1} parent=11 // pred_fallthru
          _
      $region12: #{tpu_custom_call.1} parent=5 // pred_fallthru
        _
      %p477 = scmp.lt.s32.totalorder %s38, 2
      // Predicated region
      $region33: #{tpu_custom_call.1} parent=5 // pred_check
        %p478 = pneg %p477
      $region34: #{tpu_custom_call.1} parent=5 // pred_check_branch
        %480 = sbr.rel (%p478) target = $region36
      $region35: #{tpu_custom_call.1} parent=5 // pred_region
        // Predicated region
        $region37: #{tpu_custom_call.1} parent=35 // pred_check
          %p481 = pneg %p58
        $region38: #{tpu_custom_call.1} parent=35 // pred_check_branch
          %483 = sbr.rel (%p481) target = $region40
        $region39: #{tpu_custom_call.1} parent=35 // pred_region
          %s484 = sand.u32 %s38, 1
          %s485 = scalar_lea.sflag [#allocation4], %s484
          %s486 = sand.u32 %s48, 1
          %s487 = smul.addr %s486, 8
          %s488 = scalar_lea.vmem [#allocation3], %s487
          %490 = vsyncadd %s485, 0
          %s491 = smul.addr %s38, 2
          %s492 = smul.addr %s491, 4
          %s493 = scalar_lea.hbm %s0, %s492
          %s494 = sshll.u32 %s493, 4
          %s495 = int_to_ptr.hbm [resolvable:$true] %s494
          %s496 = sshll.u32 %s488, 4
          %s497 = int_to_ptr.vmem [resolvable:$true] %s496
          %502 = dma.hbm_to_vmem [thread:$0]  %s495, 128, %s497, %s485, 64, 64, 4
        $region40: #{tpu_custom_call.1} parent=35 // pred_fallthru
          _
        // Predicated region
        $region41: #{tpu_custom_call.1} parent=35 // pred_check
          %p503 = pneg %p84
        $region42: #{tpu_custom_call.1} parent=35 // pred_check_branch
          %505 = sbr.rel (%p503) target = $region44
        $region43: #{tpu_custom_call.1} parent=35 // pred_region
          %s506 = sand.u32 %s38, 1
          %s507 = scalar_lea.sflag [#allocation7], %s506
          %s508 = sand.u32 %s74, 1
          %s509 = smul.addr %s508, 4
          %s510 = scalar_lea.vmem [#allocation6], %s509
          %512 = vsyncadd %s507, 0
          %s513 = smul.addr %s38, 4
          %s514 = scalar_lea.hbm %s1, %s513
          %s516 = sshll.u32 %s514, 4
          %s517 = int_to_ptr.hbm [resolvable:$true] %s516
          %s518 = sshll.u32 %s510, 4
          %s519 = int_to_ptr.vmem [resolvable:$true] %s518
          %521 = dma.hbm_to_vmem [thread:$0]  %s517, 64, %s519, %s507
        $region44: #{tpu_custom_call.1} parent=35 // pred_fallthru
          _
        // Predicated region
        $region45: #{tpu_custom_call.1} parent=35 // pred_check
          %p522 = pneg %p110
        $region46: #{tpu_custom_call.1} parent=35 // pred_check_branch
          %524 = sbr.rel (%p522) target = $region48
        $region47: #{tpu_custom_call.1} parent=35 // pred_region
          %s525 = sand.u32 %s38, 1
          %s526 = scalar_lea.sflag [#allocation7], %s525
          %s527 = sand.u32 %s100, 1
          %s528 = smul.addr %s527, 8
          %s529 = scalar_lea.vmem [#allocation8], %s528
          %531 = vsyncadd %s526, 0
          %s532 = smul.addr %s38, 2
          %s533 = smul.addr %s532, 4
          %s534 = scalar_lea.hbm %s2, %s533
          %s535 = sshll.u32 %s534, 4
          %s536 = int_to_ptr.hbm [resolvable:$true] %s535
          %s537 = sshll.u32 %s529, 4
          %s538 = int_to_ptr.vmem [resolvable:$true] %s537
          %543 = dma.hbm_to_vmem [thread:$0]  %s536, 128, %s538, %s526, 64, 64, 4
        $region48: #{tpu_custom_call.1} parent=35 // pred_fallthru
          _
        // Predicated region
        $region49: #{tpu_custom_call.1} parent=35 // pred_check
          %p544 = pneg %p136
        $region50: #{tpu_custom_call.1} parent=35 // pred_check_branch
          %546 = sbr.rel (%p544) target = $region52
        $region51: #{tpu_custom_call.1} parent=35 // pred_region
          %s547 = sand.u32 %s38, 1
          %s548 = scalar_lea.sflag [#allocation10], %s547
          %s549 = sand.u32 %s126, 1
          %s550 = smul.addr %s549, 4
          %s551 = scalar_lea.vmem [#allocation9], %s550
          %553 = vsyncadd %s548, 0
          %s554 = smul.addr %s38, 4
          %s555 = scalar_lea.hbm %s3, %s554
          %s557 = sshll.u32 %s555, 4
          %s558 = int_to_ptr.hbm [resolvable:$true] %s557
          %s559 = sshll.u32 %s551, 4
          %s560 = int_to_ptr.vmem [resolvable:$true] %s559
          %562 = dma.hbm_to_vmem [thread:$0]  %s558, 64, %s560, %s548
        $region52: #{tpu_custom_call.1} parent=35 // pred_fallthru
          _
        // Predicated region
        $region53: #{tpu_custom_call.1} parent=35 // pred_check
          %p563 = pneg %p267
        $region54: #{tpu_custom_call.1} parent=35 // pred_check_branch
          %565 = sbr.rel (%p563) target = $region56
        $region55: #{tpu_custom_call.1} parent=35 // pred_region
          %s566 = sand.u32 %s38, 1
          %s567 = scalar_lea.sflag [#allocation4], %s566
          %s568 = sand.u32 %s257, 1
          %s569 = smul.addr %s568, 4
          %s570 = scalar_lea.vmem [#allocation17], %s569
          %572 = vsyncadd %s567, 0
          %s573 = smul.addr %s38, 4
          %s574 = scalar_lea.hbm %s9, %s573
          %s576 = sshll.u32 %s574, 4
          %s577 = int_to_ptr.hbm [resolvable:$true] %s576
          %s578 = sshll.u32 %s570, 4
          %s579 = int_to_ptr.vmem [resolvable:$true] %s578
          %581 = dma.hbm_to_vmem [thread:$0]  %s577, 64, %s579, %s567
        $region56: #{tpu_custom_call.1} parent=35 // pred_fallthru
          _
        // Predicated region
        $region57: #{tpu_custom_call.1} parent=35 // pred_check
          %p582 = pneg %p293
        $region58: #{tpu_custom_call.1} parent=35 // pred_check_branch
          %584 = sbr.rel (%p582) target = $region60
        $region59: #{tpu_custom_call.1} parent=35 // pred_region
          %p585 = scmp.lt.s32.totalorder %s38, 1
          %s586 = scalar_select %p585, %s38, 1
          %s587 = smul.addr %s586, 2
          %s588 = smul.addr %s587, 4
          %s589 = scalar_lea.vmem %s10, %s588
        $region60: #{tpu_custom_call.1} parent=35 // pred_fallthru
          _
        // Predicated region
        $region61: #{tpu_custom_call.1} parent=35 // pred_check
          %p590 = pneg %p319
        $region62: #{tpu_custom_call.1} parent=35 // pred_check_branch
          %592 = sbr.rel (%p590) target = $region64
        $region63: #{tpu_custom_call.1} parent=35 // pred_region
          %s593 = sand.u32 %s38, 1
          %s594 = scalar_lea.sflag [#allocation7], %s593
          %s595 = sand.u32 %s309, 1
          %s596 = smul.addr %s595, 8
          %s597 = scalar_lea.vmem [#allocation18], %s596
          %599 = vsyncadd %s594, 0
          %s600 = smul.addr %s38, 8
          %s601 = scalar_lea.hbm %s11, %s600
          %s603 = sshll.u32 %s601, 4
          %s604 = int_to_ptr.hbm [resolvable:$true] %s603
          %s605 = sshll.u32 %s597, 4
          %s606 = int_to_ptr.vmem [resolvable:$true] %s605
          %608 = dma.hbm_to_vmem [thread:$0]  %s604, 128, %s606, %s594
        $region64: #{tpu_custom_call.1} parent=35 // pred_fallthru
          _
        // Predicated region
        $region65: #{tpu_custom_call.1} parent=35 // pred_check
          %p609 = pneg %p345
        $region66: #{tpu_custom_call.1} parent=35 // pred_check_branch
          %611 = sbr.rel (%p609) target = $region68
        $region67: #{tpu_custom_call.1} parent=35 // pred_region
          %p612 = scmp.lt.s32.totalorder %s38, 1
          %s613 = scalar_select %p612, %s38, 1
          %s614 = smul.addr %s613, 2
          %s615 = smul.addr %s614, 8
          %s616 = scalar_lea.vmem %s12, %s615
        $region68: #{tpu_custom_call.1} parent=35 // pred_fallthru
          _
      $region36: #{tpu_custom_call.1} parent=5 // pred_fallthru
        _
      %p617 = scmp.le.s32.totalorder 1, %s38
      %p618 = scmp.lt.s32.totalorder %s38, 3
      %p619 = pnand %p617, %p618
      %p620 = pneg %p619
      // Predicated region
      $region69: #{tpu_custom_call.1} parent=5 // pred_check
        _
      $region70: #{tpu_custom_call.1} parent=5 // pred_check_branch
        %622 = sbr.rel (%p619) target = $region72
      $region71: #{tpu_custom_call.1} parent=5 // pred_region
        %s623 = ssub.s32 %s38, 1
        %s624 = sand.u32 %s43, 1
        %s625 = scalar_lea.sflag [#allocation4], %s624
        %s626 = sand.u32 %s51, 1
        %s627 = smul.addr %s626, 8
        %s628 = scalar_lea.vmem [#allocation3], %s627
        // Predicated region
        $region73: #{tpu_custom_call.1} parent=71 // pred_check
          %p629 = pneg %p64
        $region74: #{tpu_custom_call.1} parent=71 // pred_check_branch
          %631 = sbr.rel (%p629) target = $region76
        $region75: #{tpu_custom_call.1} parent=71 // pred_region
          %633 = dma.done %s625, 128
        $region76: #{tpu_custom_call.1} parent=71 // pred_fallthru
          _
        %s634 = sand.u32 %s43, 1
        %s635 = scalar_lea.sflag [#allocation7], %s634
        %s636 = sand.u32 %s77, 1
        %s637 = smul.addr %s636, 4
        %s638 = scalar_lea.vmem [#allocation6], %s637
        // Predicated region
        $region77: #{tpu_custom_call.1} parent=71 // pred_check
          %p639 = pneg %p90
        $region78: #{tpu_custom_call.1} parent=71 // pred_check_branch
          %641 = sbr.rel (%p639) target = $region80
        $region79: #{tpu_custom_call.1} parent=71 // pred_region
          %643 = dma.done %s635, 64
        $region80: #{tpu_custom_call.1} parent=71 // pred_fallthru
          _
        %s644 = sand.u32 %s43, 1
        %s645 = scalar_lea.sflag [#allocation7], %s644
        %s646 = sand.u32 %s103, 1
        %s647 = smul.addr %s646, 8
        %s648 = scalar_lea.vmem [#allocation8], %s647
        // Predicated region
        $region81: #{tpu_custom_call.1} parent=71 // pred_check
          %p649 = pneg %p116
        $region82: #{tpu_custom_call.1} parent=71 // pred_check_branch
          %651 = sbr.rel (%p649) target = $region84
        $region83: #{tpu_custom_call.1} parent=71 // pred_region
          %653 = dma.done %s645, 128
        $region84: #{tpu_custom_call.1} parent=71 // pred_fallthru
          _
        %s654 = sand.u32 %s43, 1
        %s655 = scalar_lea.sflag [#allocation10], %s654
        %s656 = sand.u32 %s129, 1
        %s657 = smul.addr %s656, 4
        %s658 = scalar_lea.vmem [#allocation9], %s657
        // Predicated region
        $region85: #{tpu_custom_call.1} parent=71 // pred_check
          %p659 = pneg %p142
        $region86: #{tpu_custom_call.1} parent=71 // pred_check_branch
          %661 = sbr.rel (%p659) target = $region88
        $region87: #{tpu_custom_call.1} parent=71 // pred_region
          %663 = dma.done %s655, 64
        $region88: #{tpu_custom_call.1} parent=71 // pred_fallthru
          _
        // Predicated region
        $region89: #{tpu_custom_call.1} parent=71 // pred_check
          %p664 = pneg %p163
        $region90: #{tpu_custom_call.1} parent=71 // pred_check_branch
          %666 = sbr.rel (%p664) target = $region92
        $region91: #{tpu_custom_call.1} parent=71 // pred_region
          %668 = dma.done [#allocation10], 1024
        $region92: #{tpu_custom_call.1} parent=71 // pred_fallthru
          _
        // Predicated region
        $region93: #{tpu_custom_call.1} parent=71 // pred_check
          %p669 = pneg %p184
        $region94: #{tpu_custom_call.1} parent=71 // pred_check_branch
          %671 = sbr.rel (%p669) target = $region96
        $region95: #{tpu_custom_call.1} parent=71 // pred_region
          %673 = dma.done [#allocation13], 1024
        $region96: #{tpu_custom_call.1} parent=71 // pred_fallthru
          _
        // Predicated region
        $region97: #{tpu_custom_call.1} parent=71 // pred_check
          %p674 = pneg %p205
        $region98: #{tpu_custom_call.1} parent=71 // pred_check_branch
          %676 = sbr.rel (%p674) target = $region100
        $region99: #{tpu_custom_call.1} parent=71 // pred_region
          %678 = dma.done [#allocation13], 1024
        $region100: #{tpu_custom_call.1} parent=71 // pred_fallthru
          _
        // Predicated region
        $region101: #{tpu_custom_call.1} parent=71 // pred_check
          %p679 = pneg %p226
        $region102: #{tpu_custom_call.1} parent=71 // pred_check_branch
          %681 = sbr.rel (%p679) target = $region104
        $region103: #{tpu_custom_call.1} parent=71 // pred_region
          %683 = dma.done [#allocation16], 1024
        $region104: #{tpu_custom_call.1} parent=71 // pred_fallthru
          _
        %s684 = sand.u32 %s43, 1
        %s685 = scalar_lea.sflag [#allocation4], %s684
        %s686 = sand.u32 %s260, 1
        %s687 = smul.addr %s686, 4
        %s688 = scalar_lea.vmem [#allocation17], %s687
        // Predicated region
        $region105: #{tpu_custom_call.1} parent=71 // pred_check
          %p689 = pneg %p273
        $region106: #{tpu_custom_call.1} parent=71 // pred_check_branch
          %691 = sbr.rel (%p689) target = $region108
        $region107: #{tpu_custom_call.1} parent=71 // pred_region
          %693 = dma.done %s685, 64
        $region108: #{tpu_custom_call.1} parent=71 // pred_fallthru
          _
        %s694 = sand.u32 %s43, 1
        %s695 = scalar_lea.sflag [#allocation7], %s694
        %s696 = sand.u32 %s312, 1
        %s697 = smul.addr %s696, 8
        %s698 = scalar_lea.vmem [#allocation18], %s697
        // Predicated region
        $region109: #{tpu_custom_call.1} parent=71 // pred_check
          %p699 = pneg %p325
        $region110: #{tpu_custom_call.1} parent=71 // pred_check_branch
          %701 = sbr.rel (%p699) target = $region112
        $region111: #{tpu_custom_call.1} parent=71 // pred_region
          %703 = dma.done %s695, 128
        $region112: #{tpu_custom_call.1} parent=71 // pred_fallthru
          _
        %s704 = sand.u32 %s43, 1
        %s705 = scalar_lea.sflag [#allocation4], %s704
        %s706 = sand.u32 %s51, 1
        %s707 = smul.addr %s706, 8
        %s708 = scalar_lea.vmem [#allocation3], %s707
        %p709 = pneg %p64
        %p710 = pneg %p61
        %s711 = sand.u32 %s43, 1
        %s712 = scalar_lea.sflag [#allocation7], %s711
        %s713 = sand.u32 %s77, 1
        %s714 = smul.addr %s713, 4
        %s715 = scalar_lea.vmem [#allocation6], %s714
        %p716 = pneg %p90
        %p717 = pneg %p87
        %s718 = sand.u32 %s43, 1
        %s719 = scalar_lea.sflag [#allocation7], %s718
        %s720 = sand.u32 %s103, 1
        %s721 = smul.addr %s720, 8
        %s722 = scalar_lea.vmem [#allocation8], %s721
        %p723 = pneg %p116
        %p724 = pneg %p113
        %s725 = sand.u32 %s43, 1
        %s726 = scalar_lea.sflag [#allocation10], %s725
        %s727 = sand.u32 %s129, 1
        %s728 = smul.addr %s727, 4
        %s729 = scalar_lea.vmem [#allocation9], %s728
        %p730 = pneg %p142
        %p731 = pneg %p139
        %p732 = pneg %p163
        %p733 = pneg %p160
        %p734 = pneg %p184
        %p735 = pneg %p181
        %p736 = pneg %p205
        %p737 = pneg %p202
        %p738 = pneg %p226
        %p739 = pneg %p223
        %p740 = pneg %p247
        %p741 = pneg %p244
        %s742 = sand.u32 %s43, 1
        %s743 = scalar_lea.sflag [#allocation4], %s742
        %s744 = sand.u32 %s260, 1
        %s745 = smul.addr %s744, 4
        %s746 = scalar_lea.vmem [#allocation17], %s745
        %p747 = pneg %p273
        %p748 = pneg %p270
        %p749 = scmp.lt.s32.totalorder %s43, 1
        %s750 = scalar_select %p749, %s43, 1
        %s751 = smul.addr %s750, 2
        %s752 = smul.addr %s751, 4
        %s753 = scalar_lea.vmem %s10, %s752
        %p754 = pneg %p299
        %p755 = pneg %p296
        %s756 = sand.u32 %s43, 1
        %s757 = scalar_lea.sflag [#allocation7], %s756
        %s758 = sand.u32 %s312, 1
        %s759 = smul.addr %s758, 8
        %s760 = scalar_lea.vmem [#allocation18], %s759
        %p761 = pneg %p325
        %p762 = pneg %p322
        %p763 = scmp.lt.s32.totalorder %s43, 1
        %s764 = scalar_select %p763, %s43, 1
        %s765 = smul.addr %s764, 2
        %s766 = smul.addr %s765, 8
        %s767 = scalar_lea.vmem %s12, %s766
        %p768 = pneg %p351
        %p769 = pneg %p348
        %p770 = pneg %p377
        %p771 = pneg %p374
        %s772 = sand.u32 %s364, 1
        %s773 = scalar_lea.sflag [#allocation5], %s772
        %s774 = sand.u32 %s364, 1
        %s775 = smul.addr %s774, 8
        %s776 = scalar_lea.vmem [#allocation19], %s775
        %p777 = pneg %p403
        %p778 = pneg %p400
        %s779 = sand.u32 %s390, 1
        %s780 = scalar_lea.sflag [#allocation21], %s779
        %s781 = sand.u32 %s390, 1
        %s782 = smul.addr %s781, 16
        %s783 = scalar_lea.vmem [#allocation20], %s782
        %p784 = scmp.lt.s32.totalorder %s43, 1
        %s785 = scalar_select %p784, %s43, 1
        %s786 = smul.addr %s785, 2
        %s787 = smul.addr %s786, 4
        %s788 = scalar_lea.vmem %s10, %s787
        %p789 = scmp.lt.s32.totalorder %s43, 1
        %s790 = scalar_select %p789, %s43, 1
        %s791 = smul.addr %s790, 2
        %s792 = smul.addr %s791, 8
        %s793 = scalar_lea.vmem %s12, %s792
        %v795 = vld [vmem:[%s628] sm:$0xf]
        %v796 = vld [vmem:[%s628 + $0x4] sm:$0xf]
        %v797 = vld [vmem:[#allocation11] sm:$0xf]
        %v798 = vld [vmem:[#allocation11 + $0x4] sm:$0xf]
        %v799 = vld [vmem:[#allocation11 + $0x8] sm:$0xf]
        %v800 = vld [vmem:[#allocation11 + $0xc] sm:$0xf]
        %v801 = vld [vmem:[#allocation11 + $0x10] sm:$0xf]
        %v802 = vld [vmem:[#allocation11 + $0x14] sm:$0xf]
        %v803 = vld [vmem:[#allocation11 + $0x18] sm:$0xf]
        %v804 = vld [vmem:[#allocation11 + $0x1c] sm:$0xf]
        %v805 = vld [vmem:[#allocation11 + $0x20] sm:$0xf]
        %v806 = vld [vmem:[#allocation11 + $0x24] sm:$0xf]
        %v807 = vld [vmem:[#allocation11 + $0x28] sm:$0xf]
        %v808 = vld [vmem:[#allocation11 + $0x2c] sm:$0xf]
        %v809 = vld [vmem:[#allocation11 + $0x30] sm:$0xf]
        %v810 = vld [vmem:[#allocation11 + $0x34] sm:$0xf]
        %v811 = vld [vmem:[#allocation11 + $0x38] sm:$0xf]
        %v812 = vld [vmem:[#allocation11 + $0x3c] sm:$0xf]
        %v815 = vunpack.c.l.b16 %v795
        %v816 = vunpack.c.l.b16 %v796
        %v817 = vpack.c.b16 %v816, %v815
        %v835 = vunpack.c.l.b16 %v797
        %v836 = vunpack.c.l.b16 %v798
        %v837 = vunpack.c.l.b16 %v799
        %v838 = vunpack.c.l.b16 %v800
        %v839 = vunpack.c.l.b16 %v801
        %v840 = vunpack.c.l.b16 %v802
        %v841 = vunpack.c.l.b16 %v803
        %v842 = vunpack.c.l.b16 %v804
        %v843 = vunpack.c.l.b16 %v805
        %v844 = vunpack.c.l.b16 %v806
        %v845 = vunpack.c.l.b16 %v807
        %v846 = vunpack.c.l.b16 %v808
        %v847 = vunpack.c.l.b16 %v809
        %v848 = vunpack.c.l.b16 %v810
        %v849 = vunpack.c.l.b16 %v811
        %v850 = vunpack.c.l.b16 %v812
        %v851 = vpack.c.b16 %v836, %v835
        %v852 = vpack.c.b16 %v838, %v837
        %v853 = vpack.c.b16 %v840, %v839
        %v854 = vpack.c.b16 %v842, %v841
        %v855 = vpack.c.b16 %v844, %v843
        %v856 = vpack.c.b16 %v846, %v845
        %v857 = vpack.c.b16 %v848, %v847
        %v858 = vpack.c.b16 %v850, %v849
        %867 = vmatpush.bf16.msra.mxu0 %v858
        %868 = vmatpush.bf16.msra.mxu0 %v857
        %869 = vmatpush.bf16.msra.mxu0 %v856
        %870 = vmatpush.bf16.msra.mxu0 %v855
        %871 = vmatpush.bf16.msra.mxu0 %v854
        %872 = vmatpush.bf16.msra.mxu0 %v853
        %873 = vmatpush.bf16.msra.mxu0 %v852
        %874 = vmatpush.bf16.msra.mxu0 %v851
        %875 = vmatmul.bf16.gmra.mxu0 %v817
        %v876 = vpop.f32.mrf.mxu0
        %v877 = vadd.f32 0.0, %v876
        %v878 = vpop.f32.mrf.mxu0
        %v879 = vadd.f32 0.0, %v878
        %880 = vdwg.mxu0
        %v881 = vmax.f32 %v877, 0.0
        %v882 = vmax.f32 %v879, 0.0
        %v883 = vpack.c.bf16 %v881, %v881
        %v884 = vpack.c.bf16 %v882, %v882
        %885 = vst [vmem:[#allocation2] sm:$0xf] %v883
        %886 = vst [vmem:[#allocation2 + $0x4] sm:$0xf] %v884
        %v887 = vld [vmem:[%s638] sm:$0xf]
        %v888 = vld [vmem:[#allocation14] sm:$0xf]
        %v889 = vld [vmem:[#allocation14 + $0x4] sm:$0xf]
        %v890 = vld [vmem:[#allocation14 + $0x8] sm:$0xf]
        %v891 = vld [vmem:[#allocation14 + $0xc] sm:$0xf]
        %v892 = vld [vmem:[#allocation14 + $0x10] sm:$0xf]
        %v893 = vld [vmem:[#allocation14 + $0x14] sm:$0xf]
        %v894 = vld [vmem:[#allocation14 + $0x18] sm:$0xf]
        %v895 = vld [vmem:[#allocation14 + $0x1c] sm:$0xf]
        %v896 = vld [vmem:[#allocation14 + $0x20] sm:$0xf]
        %v897 = vld [vmem:[#allocation14 + $0x24] sm:$0xf]
        %v898 = vld [vmem:[#allocation14 + $0x28] sm:$0xf]
        %v899 = vld [vmem:[#allocation14 + $0x2c] sm:$0xf]
        %v900 = vld [vmem:[#allocation14 + $0x30] sm:$0xf]
        %v901 = vld [vmem:[#allocation14 + $0x34] sm:$0xf]
        %v902 = vld [vmem:[#allocation14 + $0x38] sm:$0xf]
        %v903 = vld [vmem:[#allocation14 + $0x3c] sm:$0xf]
        %v904 = vld [vmem:[%s648] sm:$0xf]
        %v905 = vld [vmem:[%s648 + $0x4] sm:$0xf]
        %v906 = vld [vmem:[#allocation2] sm:$0xf]
        %v907 = vld [vmem:[#allocation2 + $0x4] sm:$0xf]
        %v910 = vunpack.c.l.b16 %v904
        %v911 = vunpack.c.l.b16 %v905
        %v912 = vpack.c.b16 %v911, %v910
        %v915 = vunpack.c.l.b16 %v906
        %v916 = vunpack.c.l.b16 %v907
        %v917 = vpack.c.b16 %v916, %v915
        %vm919 = vcmask 130048
        %v921 = vsel %vm919, %v912, 0
        %923 = vmatpush.bf16.msra.mxu0 0
        %924 = vmatpush.bf16.msra.mxu0 0
        %925 = vmatpush.bf16.msra.mxu0 0
        %926 = vmatpush.bf16.msra.mxu0 0
        %927 = vmatpush.bf16.msra.mxu0 0
        %928 = vmatpush.bf16.msra.mxu0 0
        %929 = vmatpush.bf16.msra.mxu0 0
        %930 = vmatpush.bf16.msra.mxu0 %v917
        %931 = vmatmul.bf16.gmra.mxu0 %v921
        %v932 = vpop.f32.mrf.mxu0
        %v933 = vadd.f32 0.0, %v932
        %v934 = vpop.f32.mrf.mxu0
        %v935 = vadd.f32 0.0, %v934
        %936 = vdwg.mxu0
        %v937 = vpack.c.bf16 %v935, %v933
        %v938 = vld [vmem:[#allocation12] sm:$0xf]
        %v939 = vld [vmem:[#allocation12 + $0x4] sm:$0xf]
        %v940 = vld [vmem:[#allocation12 + $0x8] sm:$0xf]
        %v941 = vld [vmem:[#allocation12 + $0xc] sm:$0xf]
        %v942 = vld [vmem:[#allocation12 + $0x10] sm:$0xf]
        %v943 = vld [vmem:[#allocation12 + $0x14] sm:$0xf]
        %v944 = vld [vmem:[#allocation12 + $0x18] sm:$0xf]
        %v945 = vld [vmem:[#allocation12 + $0x1c] sm:$0xf]
        %v946 = vld [vmem:[#allocation12 + $0x20] sm:$0xf]
        %v947 = vld [vmem:[#allocation12 + $0x24] sm:$0xf]
        %v948 = vld [vmem:[#allocation12 + $0x28] sm:$0xf]
        %v949 = vld [vmem:[#allocation12 + $0x2c] sm:$0xf]
        %v950 = vld [vmem:[#allocation12 + $0x30] sm:$0xf]
        %v951 = vld [vmem:[#allocation12 + $0x34] sm:$0xf]
        %v952 = vld [vmem:[#allocation12 + $0x38] sm:$0xf]
        %v953 = vld [vmem:[#allocation12 + $0x3c] sm:$0xf]
        %v970 = vunpack.c.l.b16 %v938
        %v971 = vunpack.c.l.b16 %v939
        %v972 = vunpack.c.l.b16 %v940
        %v973 = vunpack.c.l.b16 %v941
        %v974 = vunpack.c.l.b16 %v942
        %v975 = vunpack.c.l.b16 %v943
        %v976 = vunpack.c.l.b16 %v944
        %v977 = vunpack.c.l.b16 %v945
        %v978 = vunpack.c.l.b16 %v946
        %v979 = vunpack.c.l.b16 %v947
        %v980 = vunpack.c.l.b16 %v948
        %v981 = vunpack.c.l.b16 %v949
        %v982 = vunpack.c.l.b16 %v950
        %v983 = vunpack.c.l.b16 %v951
        %v984 = vunpack.c.l.b16 %v952
        %v985 = vunpack.c.l.b16 %v953
        %v986 = vpack.c.b16 %v971, %v970
        %v987 = vpack.c.b16 %v973, %v972
        %v988 = vpack.c.b16 %v975, %v974
        %v989 = vpack.c.b16 %v977, %v976
        %v990 = vpack.c.b16 %v979, %v978
        %v991 = vpack.c.b16 %v981, %v980
        %v992 = vpack.c.b16 %v983, %v982
        %v993 = vpack.c.b16 %v985, %v984
        %1002 = vmatpush.bf16.msra.mxu0 %v993
        %1003 = vmatpush.bf16.msra.mxu0 %v992
        %1004 = vmatpush.bf16.msra.mxu0 %v991
        %1005 = vmatpush.bf16.msra.mxu0 %v990
        %1006 = vmatpush.bf16.msra.mxu0 %v989
        %1007 = vmatpush.bf16.msra.mxu0 %v988
        %1008 = vmatpush.bf16.msra.mxu0 %v987
        %1009 = vmatpush.bf16.msra.mxu0 %v986
        %1010 = vmatmul.bf16.gmra.mxu0 %v937
        %v1011 = vpop.f32.mrf.mxu0
        %v1012 = vadd.f32 0.0, %v1011
        %v1013 = vpop.f32.mrf.mxu0
        %v1014 = vadd.f32 0.0, %v1013
        %1015 = vdwg.mxu0
        %v1016 = vadd.f32 %v877, %v1012
        %v1017 = vadd.f32 %v879, %v1014
        %v1018 = vmax.f32 %v1016, 0.0
        %v1019 = vmax.f32 %v1017, 0.0
        %v1020 = vpack.c.bf16 %v1018, %v1018
        %v1021 = vpack.c.bf16 %v1019, %v1019
        %1022 = vst [vmem:[#allocation2] sm:$0xf] %v1020
        %1023 = vst [vmem:[#allocation2 + $0x4] sm:$0xf] %v1021
        %v1024 = vld [vmem:[%s648] sm:$0xf]
        %v1025 = vld [vmem:[%s648 + $0x4] sm:$0xf]
        %v1026 = vld [vmem:[#allocation2] sm:$0xf]
        %v1027 = vld [vmem:[#allocation2 + $0x4] sm:$0xf]
        %v1030 = vunpack.c.l.b16 %v1024
        %v1031 = vunpack.c.l.b16 %v1025
        %v1032 = vpack.c.b16 %v1031, %v1030
        %v1035 = vunpack.c.l.b16 %v1026
        %v1036 = vunpack.c.l.b16 %v1027
        %v1037 = vpack.c.b16 %v1036, %v1035
        %v1040 = vsel %vm919, %v1032, 0
        %1042 = vmatpush.bf16.msra.mxu0 0
        %1043 = vmatpush.bf16.msra.mxu0 0
        %1044 = vmatpush.bf16.msra.mxu0 0
        %1045 = vmatpush.bf16.msra.mxu0 0
        %1046 = vmatpush.bf16.msra.mxu0 0
        %1047 = vmatpush.bf16.msra.mxu0 0
        %1048 = vmatpush.bf16.msra.mxu0 0
        %1049 = vmatpush.bf16.msra.mxu0 %v1037
        %1050 = vmatmul.bf16.gmra.mxu0 %v1040
        %v1051 = vpop.f32.mrf.mxu0
        %v1052 = vadd.f32 0.0, %v1051
        %v1053 = vpop.f32.mrf.mxu0
        %v1054 = vadd.f32 0.0, %v1053
        %1055 = vdwg.mxu0
        %v1056 = vpack.c.bf16 %v1054, %v1052
        %v1057 = vld [vmem:[#allocation12] sm:$0xf]
        %v1058 = vld [vmem:[#allocation12 + $0x4] sm:$0xf]
        %v1059 = vld [vmem:[#allocation12 + $0x8] sm:$0xf]
        %v1060 = vld [vmem:[#allocation12 + $0xc] sm:$0xf]
        %v1061 = vld [vmem:[#allocation12 + $0x10] sm:$0xf]
        %v1062 = vld [vmem:[#allocation12 + $0x14] sm:$0xf]
        %v1063 = vld [vmem:[#allocation12 + $0x18] sm:$0xf]
        %v1064 = vld [vmem:[#allocation12 + $0x1c] sm:$0xf]
        %v1065 = vld [vmem:[#allocation12 + $0x20] sm:$0xf]
        %v1066 = vld [vmem:[#allocation12 + $0x24] sm:$0xf]
        %v1067 = vld [vmem:[#allocation12 + $0x28] sm:$0xf]
        %v1068 = vld [vmem:[#allocation12 + $0x2c] sm:$0xf]
        %v1069 = vld [vmem:[#allocation12 + $0x30] sm:$0xf]
        %v1070 = vld [vmem:[#allocation12 + $0x34] sm:$0xf]
        %v1071 = vld [vmem:[#allocation12 + $0x38] sm:$0xf]
        %v1072 = vld [vmem:[#allocation12 + $0x3c] sm:$0xf]
        %v1089 = vunpack.c.l.b16 %v1057
        %v1090 = vunpack.c.l.b16 %v1058
        %v1091 = vunpack.c.l.b16 %v1059
        %v1092 = vunpack.c.l.b16 %v1060
        %v1093 = vunpack.c.l.b16 %v1061
        %v1094 = vunpack.c.l.b16 %v1062
        %v1095 = vunpack.c.l.b16 %v1063
        %v1096 = vunpack.c.l.b16 %v1064
        %v1097 = vunpack.c.l.b16 %v1065
        %v1098 = vunpack.c.l.b16 %v1066
        %v1099 = vunpack.c.l.b16 %v1067
        %v1100 = vunpack.c.l.b16 %v1068
        %v1101 = vunpack.c.l.b16 %v1069
        %v1102 = vunpack.c.l.b16 %v1070
        %v1103 = vunpack.c.l.b16 %v1071
        %v1104 = vunpack.c.l.b16 %v1072
        %v1105 = vpack.c.b16 %v1090, %v1089
        %v1106 = vpack.c.b16 %v1092, %v1091
        %v1107 = vpack.c.b16 %v1094, %v1093
        %v1108 = vpack.c.b16 %v1096, %v1095
        %v1109 = vpack.c.b16 %v1098, %v1097
        %v1110 = vpack.c.b16 %v1100, %v1099
        %v1111 = vpack.c.b16 %v1102, %v1101
        %v1112 = vpack.c.b16 %v1104, %v1103
        %1121 = vmatpush.bf16.msra.mxu0 %v1112
        %1122 = vmatpush.bf16.msra.mxu0 %v1111
        %1123 = vmatpush.bf16.msra.mxu0 %v1110
        %1124 = vmatpush.bf16.msra.mxu0 %v1109
        %1125 = vmatpush.bf16.msra.mxu0 %v1108
        %1126 = vmatpush.bf16.msra.mxu0 %v1107
        %1127 = vmatpush.bf16.msra.mxu0 %v1106
        %1128 = vmatpush.bf16.msra.mxu0 %v1105
        %1129 = vmatmul.bf16.gmra.mxu0 %v1056
        %v1130 = vpop.f32.mrf.mxu0
        %v1131 = vadd.f32 0.0, %v1130
        %v1132 = vpop.f32.mrf.mxu0
        %v1133 = vadd.f32 0.0, %v1132
        %1134 = vdwg.mxu0
        %v1135 = vadd.f32 %v877, %v1131
        %v1136 = vadd.f32 %v879, %v1133
        %v1137 = vmax.f32 %v1135, 0.0
        %v1138 = vmax.f32 %v1136, 0.0
        %v1139 = vpack.c.bf16 %v1137, %v1137
        %v1140 = vpack.c.bf16 %v1138, %v1138
        %1141 = vst [vmem:[#allocation2] sm:$0xf] %v1139
        %1142 = vst [vmem:[#allocation2 + $0x4] sm:$0xf] %v1140
        %v1143 = vld [vmem:[%s658] sm:$0xf]
        %v1144 = vld [vmem:[#allocation2] sm:$0xf]
        %v1145 = vld [vmem:[#allocation2 + $0x4] sm:$0xf]
        %v1148 = vunpack.c.l.b16 %v1144
        %v1149 = vunpack.c.l.b16 %v1145
        %v1150 = vpack.c.b16 %v1149, %v1148
        %v1153 = vsel %vm919, %v1143, 0
        %1155 = vmatpush.bf16.msra.mxu0 0
        %1156 = vmatpush.bf16.msra.mxu0 0
        %1157 = vmatpush.bf16.msra.mxu0 0
        %1158 = vmatpush.bf16.msra.mxu0 0
        %1159 = vmatpush.bf16.msra.mxu0 0
        %1160 = vmatpush.bf16.msra.mxu0 0
        %1161 = vmatpush.bf16.msra.mxu0 0
        %1162 = vmatpush.bf16.msra.mxu0 %v1150
        %1163 = vmatmul.bf16.gmra.mxu0 %v1153
        %v1164 = vpop.f32.mrf.mxu0
        %v1165 = vadd.f32 0.0, %v1164
        %v1166 = vpop.f32.mrf.mxu0
        %1167 = vdwg.mxu0
        %v1168 = vpack.c.bf16 %v1165, %v1165
        %v1169 = vld [vmem:[#allocation15] sm:$0xf]
        %v1170 = vld [vmem:[#allocation15 + $0x4] sm:$0xf]
        %v1171 = vld [vmem:[#allocation15 + $0x8] sm:$0xf]
        %v1172 = vld [vmem:[#allocation15 + $0xc] sm:$0xf]
        %v1173 = vld [vmem:[#allocation15 + $0x10] sm:$0xf]
        %v1174 = vld [vmem:[#allocation15 + $0x14] sm:$0xf]
        %v1175 = vld [vmem:[#allocation15 + $0x18] sm:$0xf]
        %v1176 = vld [vmem:[#allocation15 + $0x1c] sm:$0xf]
        %v1177 = vld [vmem:[#allocation15 + $0x20] sm:$0xf]
        %v1178 = vld [vmem:[#allocation15 + $0x24] sm:$0xf]
        %v1179 = vld [vmem:[#allocation15 + $0x28] sm:$0xf]
        %v1180 = vld [vmem:[#allocation15 + $0x2c] sm:$0xf]
        %v1181 = vld [vmem:[#allocation15 + $0x30] sm:$0xf]
        %v1182 = vld [vmem:[#allocation15 + $0x34] sm:$0xf]
        %v1183 = vld [vmem:[#allocation15 + $0x38] sm:$0xf]
        %v1184 = vld [vmem:[#allocation15 + $0x3c] sm:$0xf]
        %v1201 = vunpack.c.l.b16 %v1169
        %v1202 = vunpack.c.l.b16 %v1170
        %v1203 = vunpack.c.l.b16 %v1171
        %v1204 = vunpack.c.l.b16 %v1172
        %v1205 = vunpack.c.l.b16 %v1173
        %v1206 = vunpack.c.l.b16 %v1174
        %v1207 = vunpack.c.l.b16 %v1175
        %v1208 = vunpack.c.l.b16 %v1176
        %v1209 = vunpack.c.l.b16 %v1177
        %v1210 = vunpack.c.l.b16 %v1178
        %v1211 = vunpack.c.l.b16 %v1179
        %v1212 = vunpack.c.l.b16 %v1180
        %v1213 = vunpack.c.l.b16 %v1181
        %v1214 = vunpack.c.l.b16 %v1182
        %v1215 = vunpack.c.l.b16 %v1183
        %v1216 = vunpack.c.l.b16 %v1184
        %v1217 = vpack.c.b16 %v1202, %v1201
        %v1218 = vpack.c.b16 %v1204, %v1203
        %v1219 = vpack.c.b16 %v1206, %v1205
        %v1220 = vpack.c.b16 %v1208, %v1207
        %v1221 = vpack.c.b16 %v1210, %v1209
        %v1222 = vpack.c.b16 %v1212, %v1211
        %v1223 = vpack.c.b16 %v1214, %v1213
        %v1224 = vpack.c.b16 %v1216, %v1215
        %1233 = vmatpush.bf16.msra.mxu0 %v1224
        %1234 = vmatpush.bf16.msra.mxu0 %v1223
        %1235 = vmatpush.bf16.msra.mxu0 %v1222
        %1236 = vmatpush.bf16.msra.mxu0 %v1221
        %1237 = vmatpush.bf16.msra.mxu0 %v1220
        %1238 = vmatpush.bf16.msra.mxu0 %v1219
        %1239 = vmatpush.bf16.msra.mxu0 %v1218
        %1240 = vmatpush.bf16.msra.mxu0 %v1217
        %1241 = vmatmul.bf16.gmra.mxu0 %v1168
        %v1242 = vpop.f32.mrf.mxu0
        %v1243 = vadd.f32 0.0, %v1242
        %v1244 = vpop.f32.mrf.mxu0
        %1245 = vdwg.mxu0
        %v1262 = vunpack.c.l.b16 %v888
        %v1263 = vunpack.c.l.b16 %v889
        %v1264 = vunpack.c.l.b16 %v890
        %v1265 = vunpack.c.l.b16 %v891
        %v1266 = vunpack.c.l.b16 %v892
        %v1267 = vunpack.c.l.b16 %v893
        %v1268 = vunpack.c.l.b16 %v894
        %v1269 = vunpack.c.l.b16 %v895
        %v1270 = vunpack.c.l.b16 %v896
        %v1271 = vunpack.c.l.b16 %v897
        %v1272 = vunpack.c.l.b16 %v898
        %v1273 = vunpack.c.l.b16 %v899
        %v1274 = vunpack.c.l.b16 %v900
        %v1275 = vunpack.c.l.b16 %v901
        %v1276 = vunpack.c.l.b16 %v902
        %v1277 = vunpack.c.l.b16 %v903
        %v1278 = vpack.c.b16 %v1263, %v1262
        %v1279 = vpack.c.b16 %v1265, %v1264
        %v1280 = vpack.c.b16 %v1267, %v1266
        %v1281 = vpack.c.b16 %v1269, %v1268
        %v1282 = vpack.c.b16 %v1271, %v1270
        %v1283 = vpack.c.b16 %v1273, %v1272
        %v1284 = vpack.c.b16 %v1275, %v1274
        %v1285 = vpack.c.b16 %v1277, %v1276
        %1294 = vmatpush.bf16.msra.mxu0 %v1285
        %1295 = vmatpush.bf16.msra.mxu0 %v1284
        %1296 = vmatpush.bf16.msra.mxu0 %v1283
        %1297 = vmatpush.bf16.msra.mxu0 %v1282
        %1298 = vmatpush.bf16.msra.mxu0 %v1281
        %1299 = vmatpush.bf16.msra.mxu0 %v1280
        %1300 = vmatpush.bf16.msra.mxu0 %v1279
        %1301 = vmatpush.bf16.msra.mxu0 %v1278
        %1302 = vmatmul.bf16.gmra.mxu0 %v887
        %v1303 = vpop.f32.mrf.mxu0
        %v1304 = vadd.f32 %v1243, %v1303
        %v1305 = vpop.f32.mrf.mxu0
        %1306 = vdwg.mxu0
        %v1307 = vld [vmem:[%s8] sm:$0x1]
        %v1309 = vperm.slane %v1307, 0
        %v1311 = vadd.f32 %v1304, %v1309
        %v1312 = vmax.f32 %v1311, 0.0
        %v1313 = vpack.c.bf16 %v1312, %v1312
        %v1314 = vld [vmem:[%s698] sm:$0xff]
        %v1315 = vld [vmem:[%s688] sm:$0xf]
        %vm1316 = vcmask 64512
        %v1318 = vsel %vm1316, %v1315, 0
        %vm1320 = vcmask 1043456
        %v1322 = vsel %vm1320, %v1313, 0
        %1324 = vmatpush.bf16.msra.mxu0 0
        %1325 = vmatpush.bf16.msra.mxu0 0
        %1326 = vmatpush.bf16.msra.mxu0 0
        %1327 = vmatpush.bf16.msra.mxu0 0
        %1328 = vmatpush.bf16.msra.mxu0 0
        %1329 = vmatpush.bf16.msra.mxu0 0
        %1330 = vmatpush.bf16.msra.mxu0 0
        %1331 = vmatpush.bf16.msra.mxu0 %v1322
        %1332 = vmatmul.bf16.gmra.mxu0 %v1318
        %v1333 = vpop.f32.mrf.mxu0
        %v1334 = vadd.f32 0.0, %v1333
        %v1335 = vpop.f32.mrf.mxu0
        %1336 = vdwg.mxu0
        %v1337 = vmul.f32 %v1314, %v1334
        %1338 = vst [vmem:[%s776] sm:$0xff] %v1337
        %v1339 = vld [vmem:[%s793] sm:$0xff]
        %v1340 = vld [vmem:[%s793 + $0x8] sm:$0xff]
        %v1341 = vld [vmem:[%s788] sm:$0xf]
        %v1342 = vld [vmem:[%s788 + $0x4] sm:$0xf]
        %v1345 = vunpack.c.l.b16 %v1341
        %v1346 = vunpack.c.l.b16 %v1342
        %v1347 = vpack.c.b16 %v1346, %v1345
        %v1349 = vsel %vm1316, %v1347, 0
        %1351 = vmatpush.bf16.msra.mxu0 0
        %1352 = vmatpush.bf16.msra.mxu0 0
        %1353 = vmatpush.bf16.msra.mxu0 0
        %1354 = vmatpush.bf16.msra.mxu0 0
        %1355 = vmatpush.bf16.msra.mxu0 0
        %1356 = vmatpush.bf16.msra.mxu0 0
        %1357 = vmatpush.bf16.msra.mxu0 0
        %1358 = vmatpush.bf16.msra.mxu0 %v1322
        %1359 = vmatmul.bf16.gmra.mxu0 %v1349
        %v1360 = vpop.f32.mrf.mxu0
        %v1361 = vadd.f32 0.0, %v1360
        %v1362 = vpop.f32.mrf.mxu0
        %v1363 = vadd.f32 0.0, %v1362
        %1364 = vdwg.mxu0
        %v1365 = vmul.f32 %v1339, %v1361
        %v1366 = vmul.f32 %v1340, %v1363
        %1367 = vst [vmem:[%s783] sm:$0xff] %v1365
        %1368 = vst [vmem:[%s783 + $0x8] sm:$0xff] %v1366
        %s1369 = sand.u32 %s364, 1
        %s1370 = scalar_lea.sflag [#allocation5], %s1369
        %s1371 = sand.u32 %s364, 1
        %s1372 = smul.addr %s1371, 8
        %s1373 = scalar_lea.vmem [#allocation19], %s1372
        %s1374 = sand.u32 %s390, 1
        %s1375 = scalar_lea.sflag [#allocation21], %s1374
        %s1376 = sand.u32 %s390, 1
        %s1377 = smul.addr %s1376, 16
        %s1378 = scalar_lea.vmem [#allocation20], %s1377
        // Predicated region
        $region113: #{tpu_custom_call.1} parent=71 // pred_check
          %p1379 = pneg %p374
        $region114: #{tpu_custom_call.1} parent=71 // pred_check_branch
          %1381 = sbr.rel (%p1379) target = $region116
        $region115: #{tpu_custom_call.1} parent=71 // pred_region
          %1383 = vsyncadd %s1370, 0
          %s1384 = smul.addr %s43, 8
          %s1385 = scalar_lea.hbm %s13, %s1384
          %s1387 = sshll.u32 %s1373, 4
          %s1388 = int_to_ptr.vmem [resolvable:$true] %s1387
          %s1389 = sshll.u32 %s1385, 4
          %s1390 = int_to_ptr.hbm [resolvable:$true] %s1389
          %1392 = dma.vmem_to_hbm [thread:$0]  %s1388, 128, %s1390, %s1370
        $region116: #{tpu_custom_call.1} parent=71 // pred_fallthru
          _
        // Predicated region
        $region117: #{tpu_custom_call.1} parent=71 // pred_check
          %p1393 = pneg %p400
        $region118: #{tpu_custom_call.1} parent=71 // pred_check_branch
          %1395 = sbr.rel (%p1393) target = $region120
        $region119: #{tpu_custom_call.1} parent=71 // pred_region
          %1397 = vsyncadd %s1375, 0
          %s1398 = smul.addr %s43, 2
          %s1399 = smul.addr %s1398, 8
          %s1400 = scalar_lea.hbm %s14, %s1399
          %s1401 = sshll.u32 %s1378, 4
          %s1402 = int_to_ptr.vmem [resolvable:$true] %s1401
          %s1403 = sshll.u32 %s1400, 4
          %s1404 = int_to_ptr.hbm [resolvable:$true] %s1403
          %1409 = dma.vmem_to_hbm [thread:$0]  %s1402, 256, %s1404, %s1375, 128, 128, 8
        $region120: #{tpu_custom_call.1} parent=71 // pred_fallthru
          _
      $region72: #{tpu_custom_call.1} parent=5 // pred_fallthru
        _
      %p1410 = scmp.le.s32.totalorder 2, %s38
      // Predicated region
      $region121: #{tpu_custom_call.1} parent=5 // pred_check
        %p1411 = pneg %p1410
      $region122: #{tpu_custom_call.1} parent=5 // pred_check_branch
        %1413 = sbr.rel (%p1411) target = $region124
      $region123: #{tpu_custom_call.1} parent=5 // pred_region
        %s1414 = ssub.s32 %s38, 2
        // Predicated region
        $region125: #{tpu_custom_call.1} parent=123 // pred_check
          %p1415 = pneg %p380
        $region126: #{tpu_custom_call.1} parent=123 // pred_check_branch
          %1417 = sbr.rel (%p1415) target = $region128
        $region127: #{tpu_custom_call.1} parent=123 // pred_region
          %s1418 = sand.u32 %s365, 1
          %s1419 = scalar_lea.sflag [#allocation5], %s1418
          %s1420 = sand.u32 %s365, 1
          %s1421 = smul.addr %s1420, 8
          %s1422 = scalar_lea.vmem [#allocation19], %s1421
          %1424 = dma.done %s1419, 128
        $region128: #{tpu_custom_call.1} parent=123 // pred_fallthru
          _
        // Predicated region
        $region129: #{tpu_custom_call.1} parent=123 // pred_check
          %p1425 = pneg %p406
        $region130: #{tpu_custom_call.1} parent=123 // pred_check_branch
          %1427 = sbr.rel (%p1425) target = $region132
        $region131: #{tpu_custom_call.1} parent=123 // pred_region
          %s1428 = sand.u32 %s391, 1
          %s1429 = scalar_lea.sflag [#allocation21], %s1428
          %s1430 = sand.u32 %s391, 1
          %s1431 = smul.addr %s1430, 16
          %s1432 = scalar_lea.vmem [#allocation20], %s1431
          %1434 = dma.done %s1429, 256
        $region132: #{tpu_custom_call.1} parent=123 // pred_fallthru
          _
      $region124: #{tpu_custom_call.1} parent=5 // pred_fallthru
        _
    $region6: #{tpu_custom_call.1} parent=1 // loop_footer
      %s42 = sadd.s32 1, %s38
    $region7: #{tpu_custom_call.1} parent=1 // loop_footer_branch
      %37 = sbr.rel target = $region3
    $region8: #{tpu_custom_call.1} parent=1 // loop_exit
      _
    %1435 = vsyncpa [#allocation4], 1
    %s1436 = scalar_lea.sflag [#allocation4], 1
    %1437 = vsyncpa %s1436, 1
    %1438 = vsyncpa [#allocation7], 1
    %s1439 = scalar_lea.sflag [#allocation7], 1
    %1440 = vsyncpa %s1439, 1
    %1441 = vsyncpa [#allocation10], 1
    %s1442 = scalar_lea.sflag [#allocation10], 1
    %1443 = vsyncpa %s1442, 1
    %1444 = vsyncpa [#allocation13], 1
    %1445 = vsyncpa [#allocation16], 1
    %1446 = vsyncpa [#allocation5], 1
    %s1447 = scalar_lea.sflag [#allocation5], 1
    %1448 = vsyncpa %s1447, 1
    %1449 = vsyncpa [#allocation21], 1
    %s1450 = scalar_lea.sflag [#allocation21], 1
    %1451 = vsyncpa %s1450, 1

</llo_original>
